<compile_context>
chip_gen: v7x
topology: tpu7x:2x2x1
jax: 0.10.0
libtpu: 0.0.40
codegen_flags: <defaults>
</compile_context>

<pallas_src>
import functools

import jax
import jax.numpy as jnp
from jax.experimental import pallas as pl
from jax.experimental.pallas import tpu as pltpu


# ----------------------------------------------------------------------------
# Fused kernel: input projection -> unrolled LSTM recurrence -> MLP -> log-softmax
# ----------------------------------------------------------------------------
def rnn_fused_kernel(x_ref, wih_ref, whh_ref, b_ref, w1_ref, b1_ref, w2_ref, b2_ref,
                     out_ref):
    seq, B, Ipad = x_ref.shape                 # x is seq-major: (seq, B, Ipad)
    H = whh_ref.shape[0]
    C = w2_ref.shape[1]

    # ---- Hoisted input projection: one MXU pass for all timesteps ----------
    x_all = x_ref[...].reshape(seq * B, Ipad)                   # (seq*B, Ipad)
    xg = jnp.dot(x_all, wih_ref[...],
                 preferred_element_type=jnp.float32) + b_ref[...]
    xg = xg.reshape(seq, B, 4 * H)                              # seq-major (seq, B, 4H)

    w_hh = whh_ref[...]                                         # (H, 4H)

    # ---- Fully-unrolled recurrence (seq is a static Python int) ------------
    h = jnp.zeros((B, H), jnp.float32)
    c = jnp.zeros((B, H), jnp.float32)
    hs_list = []
    for s in range(seq):
        # dot-first so the xg add can land on the MXU result path (MRB on v7x).
        gates = jnp.dot(h, w_hh, preferred_element_type=jnp.float32) + xg[s]
        sg = jax.nn.sigmoid(gates)          # full (B, 4H) vreg: one EUP pass
        th = jnp.tanh(gates)                # full (B, 4H) vreg: one EUP pass
        i_g = sg[:, 0 * H:1 * H]
        f_g = sg[:, 1 * H:2 * H]
        g_g = th[:, 2 * H:3 * H]
        o_g = sg[:, 3 * H:4 * H]
        c = f_g * c + i_g * g_g
        h = o_g * jnp.tanh(c)
        hs_list.append(h)                   # register-resident, no VMEM round-trip

    # ---- Assemble history in registers, then classifier --------------------
    hs = jnp.stack(hs_list, axis=1).reshape(B * seq, H)         # (B*seq, H)
    z1 = jnp.dot(hs, w1_ref[...],
                 preferred_element_type=jnp.float32) + b1_ref[...]
    a1 = jnp.maximum(z1, 0.0)                                   # ReLU
    logits = jnp.dot(a1, w2_ref[...],
                     preferred_element_type=jnp.float32) + b2_ref[...]
    logits = logits.reshape(B, seq, C)                          # (B, seq, C)

    # ---- log-softmax over the seq axis (axis=1), as nn.LogSoftmax(1) -------
    m = jnp.max(logits, axis=1, keepdims=True)
    shifted = logits - m
    lse = jnp.log(jnp.sum(jnp.exp(shifted), axis=1, keepdims=True))
    out_ref[...] = shifted - lse


def rnn_model_forward(x, params):
    """x: (B, seq, 26) float32. params: dict of weights (see init below)."""
    B, seq, I = x.shape
    H = params["w_hh"].shape[0]          # rnn_hidden
    M = params["w1"].shape[1]            # mlp_hidden
    C = params["w2"].shape[1]            # num_classes

    # Tiny fused reorders/pads in the wrapper (no HBM round-trip of note):
    Ipad = ((I + 7) // 8) * 8            # 26 -> 32: sublane-aligned contraction dim
    x_sm = jnp.transpose(x, (1, 0, 2))                          # (seq, B, I), ~1.6 KB
    x_sm = jnp.pad(x_sm, ((0, 0), (0, 0), (0, Ipad - I)))
    w_ih = jnp.pad(params["w_ih"], ((0, Ipad - I), (0, 0)))     # (Ipad, 4H)

    bias = (params["b_ih"] + params["b_hh"]).reshape(1, 4 * H)

    vmem_spec = pl.BlockSpec(memory_space=pltpu.MemorySpace.VMEM)
    return pl.pallas_call(
        rnn_fused_kernel,
        out_shape=jax.ShapeDtypeStruct((B, seq, C), jnp.float32),
        in_specs=[vmem_spec] * 8,
        out_specs=vmem_spec,
    )(x_sm, w_ih, params["w_hh"], bias,
      params["w1"], params["b1"].reshape(1, M),
      params["w2"], params["b2"].reshape(1, C))


# ----------------------------------------------------------------------------
# Pure-JAX reference (same math) for correctness check.
# ----------------------------------------------------------------------------
def rnn_model_reference(x, params):
    B, seq, I = x.shape
    H = params["w_hh"].shape[0]
    h = jnp.zeros((B, H), jnp.float32)
    c = jnp.zeros((B, H), jnp.float32)
    bias = (params["b_ih"] + params["b_hh"])[None, :]
    outs = []
    for s in range(seq):
        gates = x[:, s, :] @ params["w_ih"] + h @ params["w_hh"] + bias
        i = jax.nn.sigmoid(gates[:, 0 * H:1 * H])
        f = jax.nn.sigmoid(gates[:, 1 * H:2 * H])
        g = jnp.tanh(gates[:, 2 * H:3 * H])
        o = jax.nn.sigmoid(gates[:, 3 * H:4 * H])
        c = f * c + i * g
        h = o * jnp.tanh(c)
        outs.append(h[:, None, :])
    hs = jnp.concatenate(outs, axis=1)                          # (B, seq, H)
    z1 = hs @ params["w1"] + params["b1"]
    a1 = jnp.maximum(z1, 0.0)
    logits = a1 @ params["w2"] + params["b2"]                   # (B, seq, C)
    return jax.nn.log_softmax(logits, axis=1)                   # softmax over seq axis


def init_params(key, input_size=26, rnn_hidden=32, mlp_hidden=32, num_classes=10):
    ks = jax.random.split(key, 8)
    H, M, C, I = rnn_hidden, mlp_hidden, num_classes, input_size
    u = lambda k, shape, bound: jax.random.uniform(k, shape, jnp.float32, -bound, bound)
    sH = 1.0 / jnp.sqrt(H)
    # Stored pre-transposed: (in_features, out_features)
    return {
        "w_ih": u(ks[0], (I, 4 * H), sH),
        "w_hh": u(ks[1], (H, 4 * H), sH),
        "b_ih": u(ks[2], (4 * H,), sH),
        "b_hh": u(ks[3], (4 * H,), sH),
        "w1": u(ks[4], (H, M), 1.0 / jnp.sqrt(H)),
        "b1": u(ks[5], (M,), 1.0 / jnp.sqrt(H)),
        "w2": u(ks[6], (M, C), 1.0 / jnp.sqrt(M)),
        "b2": u(ks[7], (C,), 1.0 / jnp.sqrt(M)),
    }


if __name__ == "__main__":
    key = jax.random.PRNGKey(0)
    k_x, k_p = jax.random.split(key)

    B, seq, I = 2, 8, 26
    params = init_params(k_p, input_size=I, rnn_hidden=32, mlp_hidden=32, num_classes=10)
    x = jax.random.normal(k_x, (B, seq, I), jnp.float32)

    out = jax.jit(functools.partial(rnn_model_forward, params=params))(x)
    out = jax.block_until_ready(out)

    ref = rnn_model_reference(x, params)
    assert out.shape == (B, seq, 10)
    assert jnp.allclose(out, ref, atol=2e-3, rtol=2e-3), "mismatch vs reference"

    print("KERNEL_OK")
</pallas_src>

<mosaic_0001>
module attributes {stable_mosaic.version = 11 : i64} {
  func.func @rnn_fused_kernel(%arg0: memref<8x2x32xf32, #tpu.memory_space<vmem>>, %arg1: memref<32x128xf32, #tpu.memory_space<vmem>>, %arg2: memref<32x128xf32, #tpu.memory_space<vmem>>, %arg3: memref<1x128xf32, #tpu.memory_space<vmem>>, %arg4: memref<32x32xf32, #tpu.memory_space<vmem>>, %arg5: memref<1x32xf32, #tpu.memory_space<vmem>>, %arg6: memref<32x10xf32, #tpu.memory_space<vmem>>, %arg7: memref<1x10xf32, #tpu.memory_space<vmem>>, %arg8: memref<2x8x10xf32, #tpu.memory_space<vmem>>) attributes {dimension_semantics = [], scalar_prefetch = 0 : i64, scratch_operands = 0 : i64, tpu.core_type = #tpu.core_type<tc>} {
    %c0 = arith.constant 0 : index
    %c0_0 = arith.constant 0 : index
    %c0_1 = arith.constant 0 : index
    %0 = vector.load %arg0[%c0, %c0_0, %c0_1] : memref<8x2x32xf32, #tpu.memory_space<vmem>>, vector<8x2x32xf32>
    %1 = vector.shape_cast %0 : vector<8x2x32xf32> to vector<16x32xf32>
    %c0_2 = arith.constant 0 : index
    %c0_3 = arith.constant 0 : index
    %2 = vector.load %arg1[%c0_2, %c0_3] : memref<32x128xf32, #tpu.memory_space<vmem>>, vector<32x128xf32>
    %cst = arith.constant dense<0.000000e+00> : vector<16x128xf32>
    %3 = tpu.matmul %1, %2, %cst {dimension_numbers = #tpu.dot_dimension_numbers<[1], [0], [0], [1], [0, 0, 1, 1], [], []>} : vector<16x32xf32>, vector<32x128xf32>, vector<16x128xf32> -> vector<16x128xf32>
    %c0_4 = arith.constant 0 : index
    %c0_5 = arith.constant 0 : index
    %4 = vector.load %arg3[%c0_4, %c0_5] : memref<1x128xf32, #tpu.memory_space<vmem>>, vector<1x128xf32>
    %5 = vector.broadcast %4 : vector<1x128xf32> to vector<16x128xf32>
    %6 = arith.addf %3, %5 : vector<16x128xf32>
    %7 = vector.shape_cast %6 : vector<16x128xf32> to vector<8x2x128xf32>
    %c0_6 = arith.constant 0 : index
    %c0_7 = arith.constant 0 : index
    %8 = vector.load %arg2[%c0_6, %c0_7] : memref<32x128xf32, #tpu.memory_space<vmem>>, vector<32x128xf32>
    %cst_8 = arith.constant 0.000000e+00 : f32
    %9 = vector.broadcast %cst_8 : f32 to vector<2x32xf32>
    %cst_9 = arith.constant 0.000000e+00 : f32
    %10 = vector.broadcast %cst_9 : f32 to vector<2x32xf32>
    %cst_10 = arith.constant dense<0.000000e+00> : vector<2x128xf32>
    %11 = tpu.matmul %9, %8, %cst_10 {dimension_numbers = #tpu.dot_dimension_numbers<[1], [0], [0], [1], [0, 0, 1, 1], [], []>} : vector<2x32xf32>, vector<32x128xf32>, vector<2x128xf32> -> vector<2x128xf32>
    %12 = vector.extract_strided_slice %7 {offsets = [0, 0, 0], sizes = [1, 2, 128], strides = [1, 1, 1]} : vector<8x2x128xf32> to vector<1x2x128xf32>
    %13 = vector.shape_cast %12 : vector<1x2x128xf32> to vector<2x128xf32>
    %14 = arith.addf %11, %13 : vector<2x128xf32>
    %15 = arith.negf %14 : vector<2x128xf32>
    %16 = math.exp %15 : vector<2x128xf32>
    %cst_11 = arith.constant 1.000000e+00 : f32
    %17 = vector.broadcast %cst_11 : f32 to vector<2x128xf32>
    %18 = arith.addf %17, %16 : vector<2x128xf32>
    %19 = arith.divf %17, %18 : vector<2x128xf32>
    %20 = math.tanh %14 : vector<2x128xf32>
    %21 = vector.extract_strided_slice %19 {offsets = [0, 0], sizes = [2, 32], strides = [1, 1]} : vector<2x128xf32> to vector<2x32xf32>
    %22 = vector.extract_strided_slice %19 {offsets = [0, 32], sizes = [2, 32], strides = [1, 1]} : vector<2x128xf32> to vector<2x32xf32>
    %23 = vector.extract_strided_slice %20 {offsets = [0, 64], sizes = [2, 32], strides = [1, 1]} : vector<2x128xf32> to vector<2x32xf32>
    %24 = vector.extract_strided_slice %19 {offsets = [0, 96], sizes = [2, 32], strides = [1, 1]} : vector<2x128xf32> to vector<2x32xf32>
    %25 = arith.mulf %22, %10 : vector<2x32xf32>
    %26 = arith.mulf %21, %23 : vector<2x32xf32>
    %27 = arith.addf %25, %26 : vector<2x32xf32>
    %28 = math.tanh %27 : vector<2x32xf32>
    %29 = arith.mulf %24, %28 : vector<2x32xf32>
    %cst_12 = arith.constant dense<0.000000e+00> : vector<2x128xf32>
    %30 = tpu.matmul %29, %8, %cst_12 {dimension_numbers = #tpu.dot_dimension_numbers<[1], [0], [0], [1], [0, 0, 1, 1], [], []>} : vector<2x32xf32>, vector<32x128xf32>, vector<2x128xf32> -> vector<2x128xf32>
    %31 = vector.extract_strided_slice %7 {offsets = [1, 0, 0], sizes = [1, 2, 128], strides = [1, 1, 1]} : vector<8x2x128xf32> to vector<1x2x128xf32>
    %32 = vector.shape_cast %31 : vector<1x2x128xf32> to vector<2x128xf32>
    %33 = arith.addf %30, %32 : vector<2x128xf32>
    %34 = arith.negf %33 : vector<2x128xf32>
    %35 = math.exp %34 : vector<2x128xf32>
    %cst_13 = arith.constant 1.000000e+00 : f32
    %36 = vector.broadcast %cst_13 : f32 to vector<2x128xf32>
    %37 = arith.addf %36, %35 : vector<2x128xf32>
    %38 = arith.divf %36, %37 : vector<2x128xf32>
    %39 = math.tanh %33 : vector<2x128xf32>
    %40 = vector.extract_strided_slice %38 {offsets = [0, 0], sizes = [2, 32], strides = [1, 1]} : vector<2x128xf32> to vector<2x32xf32>
    %41 = vector.extract_strided_slice %38 {offsets = [0, 32], sizes = [2, 32], strides = [1, 1]} : vector<2x128xf32> to vector<2x32xf32>
    %42 = vector.extract_strided_slice %39 {offsets = [0, 64], sizes = [2, 32], strides = [1, 1]} : vector<2x128xf32> to vector<2x32xf32>
    %43 = vector.extract_strided_slice %38 {offsets = [0, 96], sizes = [2, 32], strides = [1, 1]} : vector<2x128xf32> to vector<2x32xf32>
    %44 = arith.mulf %41, %27 : vector<2x32xf32>
    %45 = arith.mulf %40, %42 : vector<2x32xf32>
    %46 = arith.addf %44, %45 : vector<2x32xf32>
    %47 = math.tanh %46 : vector<2x32xf32>
    %48 = arith.mulf %43, %47 : vector<2x32xf32>
    %cst_14 = arith.constant dense<0.000000e+00> : vector<2x128xf32>
    %49 = tpu.matmul %48, %8, %cst_14 {dimension_numbers = #tpu.dot_dimension_numbers<[1], [0], [0], [1], [0, 0, 1, 1], [], []>} : vector<2x32xf32>, vector<32x128xf32>, vector<2x128xf32> -> vector<2x128xf32>
    %50 = vector.extract_strided_slice %7 {offsets = [2, 0, 0], sizes = [1, 2, 128], strides = [1, 1, 1]} : vector<8x2x128xf32> to vector<1x2x128xf32>
    %51 = vector.shape_cast %50 : vector<1x2x128xf32> to vector<2x128xf32>
    %52 = arith.addf %49, %51 : vector<2x128xf32>
    %53 = arith.negf %52 : vector<2x128xf32>
    %54 = math.exp %53 : vector<2x128xf32>
    %cst_15 = arith.constant 1.000000e+00 : f32
    %55 = vector.broadcast %cst_15 : f32 to vector<2x128xf32>
    %56 = arith.addf %55, %54 : vector<2x128xf32>
    %57 = arith.divf %55, %56 : vector<2x128xf32>
    %58 = math.tanh %52 : vector<2x128xf32>
    %59 = vector.extract_strided_slice %57 {offsets = [0, 0], sizes = [2, 32], strides = [1, 1]} : vector<2x128xf32> to vector<2x32xf32>
    %60 = vector.extract_strided_slice %57 {offsets = [0, 32], sizes = [2, 32], strides = [1, 1]} : vector<2x128xf32> to vector<2x32xf32>
    %61 = vector.extract_strided_slice %58 {offsets = [0, 64], sizes = [2, 32], strides = [1, 1]} : vector<2x128xf32> to vector<2x32xf32>
    %62 = vector.extract_strided_slice %57 {offsets = [0, 96], sizes = [2, 32], strides = [1, 1]} : vector<2x128xf32> to vector<2x32xf32>
    %63 = arith.mulf %60, %46 : vector<2x32xf32>
    %64 = arith.mulf %59, %61 : vector<2x32xf32>
    %65 = arith.addf %63, %64 : vector<2x32xf32>
    %66 = math.tanh %65 : vector<2x32xf32>
    %67 = arith.mulf %62, %66 : vector<2x32xf32>
    %cst_16 = arith.constant dense<0.000000e+00> : vector<2x128xf32>
    %68 = tpu.matmul %67, %8, %cst_16 {dimension_numbers = #tpu.dot_dimension_numbers<[1], [0], [0], [1], [0, 0, 1, 1], [], []>} : vector<2x32xf32>, vector<32x128xf32>, vector<2x128xf32> -> vector<2x128xf32>
    %69 = vector.extract_strided_slice %7 {offsets = [3, 0, 0], sizes = [1, 2, 128], strides = [1, 1, 1]} : vector<8x2x128xf32> to vector<1x2x128xf32>
    %70 = vector.shape_cast %69 : vector<1x2x128xf32> to vector<2x128xf32>
    %71 = arith.addf %68, %70 : vector<2x128xf32>
    %72 = arith.negf %71 : vector<2x128xf32>
    %73 = math.exp %72 : vector<2x128xf32>
    %cst_17 = arith.constant 1.000000e+00 : f32
    %74 = vector.broadcast %cst_17 : f32 to vector<2x128xf32>
    %75 = arith.addf %74, %73 : vector<2x128xf32>
    %76 = arith.divf %74, %75 : vector<2x128xf32>
    %77 = math.tanh %71 : vector<2x128xf32>
    %78 = vector.extract_strided_slice %76 {offsets = [0, 0], sizes = [2, 32], strides = [1, 1]} : vector<2x128xf32> to vector<2x32xf32>
    %79 = vector.extract_strided_slice %76 {offsets = [0, 32], sizes = [2, 32], strides = [1, 1]} : vector<2x128xf32> to vector<2x32xf32>
    %80 = vector.extract_strided_slice %77 {offsets = [0, 64], sizes = [2, 32], strides = [1, 1]} : vector<2x128xf32> to vector<2x32xf32>
    %81 = vector.extract_strided_slice %76 {offsets = [0, 96], sizes = [2, 32], strides = [1, 1]} : vector<2x128xf32> to vector<2x32xf32>
    %82 = arith.mulf %79, %65 : vector<2x32xf32>
    %83 = arith.mulf %78, %80 : vector<2x32xf32>
    %84 = arith.addf %82, %83 : vector<2x32xf32>
    %85 = math.tanh %84 : vector<2x32xf32>
    %86 = arith.mulf %81, %85 : vector<2x32xf32>
    %cst_18 = arith.constant dense<0.000000e+00> : vector<2x128xf32>
    %87 = tpu.matmul %86, %8, %cst_18 {dimension_numbers = #tpu.dot_dimension_numbers<[1], [0], [0], [1], [0, 0, 1, 1], [], []>} : vector<2x32xf32>, vector<32x128xf32>, vector<2x128xf32> -> vector<2x128xf32>
    %88 = vector.extract_strided_slice %7 {offsets = [4, 0, 0], sizes = [1, 2, 128], strides = [1, 1, 1]} : vector<8x2x128xf32> to vector<1x2x128xf32>
    %89 = vector.shape_cast %88 : vector<1x2x128xf32> to vector<2x128xf32>
    %90 = arith.addf %87, %89 : vector<2x128xf32>
    %91 = arith.negf %90 : vector<2x128xf32>
    %92 = math.exp %91 : vector<2x128xf32>
    %cst_19 = arith.constant 1.000000e+00 : f32
    %93 = vector.broadcast %cst_19 : f32 to vector<2x128xf32>
    %94 = arith.addf %93, %92 : vector<2x128xf32>
    %95 = arith.divf %93, %94 : vector<2x128xf32>
    %96 = math.tanh %90 : vector<2x128xf32>
    %97 = vector.extract_strided_slice %95 {offsets = [0, 0], sizes = [2, 32], strides = [1, 1]} : vector<2x128xf32> to vector<2x32xf32>
    %98 = vector.extract_strided_slice %95 {offsets = [0, 32], sizes = [2, 32], strides = [1, 1]} : vector<2x128xf32> to vector<2x32xf32>
    %99 = vector.extract_strided_slice %96 {offsets = [0, 64], sizes = [2, 32], strides = [1, 1]} : vector<2x128xf32> to vector<2x32xf32>
    %100 = vector.extract_strided_slice %95 {offsets = [0, 96], sizes = [2, 32], strides = [1, 1]} : vector<2x128xf32> to vector<2x32xf32>
    %101 = arith.mulf %98, %84 : vector<2x32xf32>
    %102 = arith.mulf %97, %99 : vector<2x32xf32>
    %103 = arith.addf %101, %102 : vector<2x32xf32>
    %104 = math.tanh %103 : vector<2x32xf32>
    %105 = arith.mulf %100, %104 : vector<2x32xf32>
    %cst_20 = arith.constant dense<0.000000e+00> : vector<2x128xf32>
    %106 = tpu.matmul %105, %8, %cst_20 {dimension_numbers = #tpu.dot_dimension_numbers<[1], [0], [0], [1], [0, 0, 1, 1], [], []>} : vector<2x32xf32>, vector<32x128xf32>, vector<2x128xf32> -> vector<2x128xf32>
    %107 = vector.extract_strided_slice %7 {offsets = [5, 0, 0], sizes = [1, 2, 128], strides = [1, 1, 1]} : vector<8x2x128xf32> to vector<1x2x128xf32>
    %108 = vector.shape_cast %107 : vector<1x2x128xf32> to vector<2x128xf32>
    %109 = arith.addf %106, %108 : vector<2x128xf32>
    %110 = arith.negf %109 : vector<2x128xf32>
    %111 = math.exp %110 : vector<2x128xf32>
    %cst_21 = arith.constant 1.000000e+00 : f32
    %112 = vector.broadcast %cst_21 : f32 to vector<2x128xf32>
    %113 = arith.addf %112, %111 : vector<2x128xf32>
    %114 = arith.divf %112, %113 : vector<2x128xf32>
    %115 = math.tanh %109 : vector<2x128xf32>
    %116 = vector.extract_strided_slice %114 {offsets = [0, 0], sizes = [2, 32], strides = [1, 1]} : vector<2x128xf32> to vector<2x32xf32>
    %117 = vector.extract_strided_slice %114 {offsets = [0, 32], sizes = [2, 32], strides = [1, 1]} : vector<2x128xf32> to vector<2x32xf32>
    %118 = vector.extract_strided_slice %115 {offsets = [0, 64], sizes = [2, 32], strides = [1, 1]} : vector<2x128xf32> to vector<2x32xf32>
    %119 = vector.extract_strided_slice %114 {offsets = [0, 96], sizes = [2, 32], strides = [1, 1]} : vector<2x128xf32> to vector<2x32xf32>
    %120 = arith.mulf %117, %103 : vector<2x32xf32>
    %121 = arith.mulf %116, %118 : vector<2x32xf32>
    %122 = arith.addf %120, %121 : vector<2x32xf32>
    %123 = math.tanh %122 : vector<2x32xf32>
    %124 = arith.mulf %119, %123 : vector<2x32xf32>
    %cst_22 = arith.constant dense<0.000000e+00> : vector<2x128xf32>
    %125 = tpu.matmul %124, %8, %cst_22 {dimension_numbers = #tpu.dot_dimension_numbers<[1], [0], [0], [1], [0, 0, 1, 1], [], []>} : vector<2x32xf32>, vector<32x128xf32>, vector<2x128xf32> -> vector<2x128xf32>
    %126 = vector.extract_strided_slice %7 {offsets = [6, 0, 0], sizes = [1, 2, 128], strides = [1, 1, 1]} : vector<8x2x128xf32> to vector<1x2x128xf32>
    %127 = vector.shape_cast %126 : vector<1x2x128xf32> to vector<2x128xf32>
    %128 = arith.addf %125, %127 : vector<2x128xf32>
    %129 = arith.negf %128 : vector<2x128xf32>
    %130 = math.exp %129 : vector<2x128xf32>
    %cst_23 = arith.constant 1.000000e+00 : f32
    %131 = vector.broadcast %cst_23 : f32 to vector<2x128xf32>
    %132 = arith.addf %131, %130 : vector<2x128xf32>
    %133 = arith.divf %131, %132 : vector<2x128xf32>
    %134 = math.tanh %128 : vector<2x128xf32>
    %135 = vector.extract_strided_slice %133 {offsets = [0, 0], sizes = [2, 32], strides = [1, 1]} : vector<2x128xf32> to vector<2x32xf32>
    %136 = vector.extract_strided_slice %133 {offsets = [0, 32], sizes = [2, 32], strides = [1, 1]} : vector<2x128xf32> to vector<2x32xf32>
    %137 = vector.extract_strided_slice %134 {offsets = [0, 64], sizes = [2, 32], strides = [1, 1]} : vector<2x128xf32> to vector<2x32xf32>
    %138 = vector.extract_strided_slice %133 {offsets = [0, 96], sizes = [2, 32], strides = [1, 1]} : vector<2x128xf32> to vector<2x32xf32>
    %139 = arith.mulf %136, %122 : vector<2x32xf32>
    %140 = arith.mulf %135, %137 : vector<2x32xf32>
    %141 = arith.addf %139, %140 : vector<2x32xf32>
    %142 = math.tanh %141 : vector<2x32xf32>
    %143 = arith.mulf %138, %142 : vector<2x32xf32>
    %cst_24 = arith.constant dense<0.000000e+00> : vector<2x128xf32>
    %144 = tpu.matmul %143, %8, %cst_24 {dimension_numbers = #tpu.dot_dimension_numbers<[1], [0], [0], [1], [0, 0, 1, 1], [], []>} : vector<2x32xf32>, vector<32x128xf32>, vector<2x128xf32> -> vector<2x128xf32>
    %145 = vector.extract_strided_slice %7 {offsets = [7, 0, 0], sizes = [1, 2, 128], strides = [1, 1, 1]} : vector<8x2x128xf32> to vector<1x2x128xf32>
    %146 = vector.shape_cast %145 : vector<1x2x128xf32> to vector<2x128xf32>
    %147 = arith.addf %144, %146 : vector<2x128xf32>
    %148 = arith.negf %147 : vector<2x128xf32>
    %149 = math.exp %148 : vector<2x128xf32>
    %cst_25 = arith.constant 1.000000e+00 : f32
    %150 = vector.broadcast %cst_25 : f32 to vector<2x128xf32>
    %151 = arith.addf %150, %149 : vector<2x128xf32>
    %152 = arith.divf %150, %151 : vector<2x128xf32>
    %153 = math.tanh %147 : vector<2x128xf32>
    %154 = vector.extract_strided_slice %152 {offsets = [0, 0], sizes = [2, 32], strides = [1, 1]} : vector<2x128xf32> to vector<2x32xf32>
    %155 = vector.extract_strided_slice %152 {offsets = [0, 32], sizes = [2, 32], strides = [1, 1]} : vector<2x128xf32> to vector<2x32xf32>
    %156 = vector.extract_strided_slice %153 {offsets = [0, 64], sizes = [2, 32], strides = [1, 1]} : vector<2x128xf32> to vector<2x32xf32>
    %157 = vector.extract_strided_slice %152 {offsets = [0, 96], sizes = [2, 32], strides = [1, 1]} : vector<2x128xf32> to vector<2x32xf32>
    %158 = arith.mulf %155, %141 : vector<2x32xf32>
    %159 = arith.mulf %154, %156 : vector<2x32xf32>
    %160 = arith.addf %158, %159 : vector<2x32xf32>
    %161 = math.tanh %160 : vector<2x32xf32>
    %162 = arith.mulf %157, %161 : vector<2x32xf32>
    %163 = vector.shape_cast %29 : vector<2x32xf32> to vector<2x1x32xf32>
    %164 = vector.shape_cast %48 : vector<2x32xf32> to vector<2x1x32xf32>
    %165 = vector.shape_cast %67 : vector<2x32xf32> to vector<2x1x32xf32>
    %166 = vector.shape_cast %86 : vector<2x32xf32> to vector<2x1x32xf32>
    %167 = vector.shape_cast %105 : vector<2x32xf32> to vector<2x1x32xf32>
    %168 = vector.shape_cast %124 : vector<2x32xf32> to vector<2x1x32xf32>
    %169 = vector.shape_cast %143 : vector<2x32xf32> to vector<2x1x32xf32>
    %170 = vector.shape_cast %162 : vector<2x32xf32> to vector<2x1x32xf32>
    %171 = tpu.concatenate %163, %164, %165, %166, %167, %168, %169, %170 in 1 : vector<2x1x32xf32>, vector<2x1x32xf32>, vector<2x1x32xf32>, vector<2x1x32xf32>, vector<2x1x32xf32>, vector<2x1x32xf32>, vector<2x1x32xf32>, vector<2x1x32xf32> -> vector<2x8x32xf32>
    %172 = vector.shape_cast %171 : vector<2x8x32xf32> to vector<16x32xf32>
    %c0_26 = arith.constant 0 : index
    %c0_27 = arith.constant 0 : index
    %173 = vector.load %arg4[%c0_26, %c0_27] : memref<32x32xf32, #tpu.memory_space<vmem>>, vector<32x32xf32>
    %cst_28 = arith.constant dense<0.000000e+00> : vector<16x32xf32>
    %174 = tpu.matmul %172, %173, %cst_28 {dimension_numbers = #tpu.dot_dimension_numbers<[1], [0], [0], [1], [0, 0, 1, 1], [], []>} : vector<16x32xf32>, vector<32x32xf32>, vector<16x32xf32> -> vector<16x32xf32>
    %c0_29 = arith.constant 0 : index
    %c0_30 = arith.constant 0 : index
    %175 = vector.load %arg5[%c0_29, %c0_30] : memref<1x32xf32, #tpu.memory_space<vmem>>, vector<1x32xf32>
    %176 = vector.broadcast %175 : vector<1x32xf32> to vector<16x32xf32>
    %177 = arith.addf %174, %176 : vector<16x32xf32>
    %cst_31 = arith.constant 0.000000e+00 : f32
    %178 = vector.broadcast %cst_31 : f32 to vector<16x32xf32>
    %179 = arith.maximumf %177, %178 : vector<16x32xf32>
    %c0_32 = arith.constant 0 : index
    %c0_33 = arith.constant 0 : index
    %180 = vector.load %arg6[%c0_32, %c0_33] : memref<32x10xf32, #tpu.memory_space<vmem>>, vector<32x10xf32>
    %cst_34 = arith.constant dense<0.000000e+00> : vector<16x10xf32>
    %181 = tpu.matmul %179, %180, %cst_34 {dimension_numbers = #tpu.dot_dimension_numbers<[1], [0], [0], [1], [0, 0, 1, 1], [], []>} : vector<16x32xf32>, vector<32x10xf32>, vector<16x10xf32> -> vector<16x10xf32>
    %c0_35 = arith.constant 0 : index
    %c0_36 = arith.constant 0 : index
    %182 = vector.load %arg7[%c0_35, %c0_36] : memref<1x10xf32, #tpu.memory_space<vmem>>, vector<1x10xf32>
    %183 = vector.broadcast %182 : vector<1x10xf32> to vector<16x10xf32>
    %184 = arith.addf %181, %183 : vector<16x10xf32>
    %185 = vector.shape_cast %184 : vector<16x10xf32> to vector<2x8x10xf32>
    %cst_37 = arith.constant dense<0xFF800000> : vector<2x10xf32>
    %186 = vector.multi_reduction <maximumf>, %185, %cst_37 [1] : vector<2x8x10xf32> to vector<2x10xf32>
    %187 = vector.shape_cast %186 : vector<2x10xf32> to vector<2x1x10xf32>
    %188 = vector.broadcast %187 : vector<2x1x10xf32> to vector<2x8x10xf32>
    %189 = arith.subf %185, %188 : vector<2x8x10xf32>
    %190 = math.exp %189 : vector<2x8x10xf32>
    %cst_38 = arith.constant dense<0.000000e+00> : vector<2x10xf32>
    %191 = vector.multi_reduction <add>, %190, %cst_38 [1] : vector<2x8x10xf32> to vector<2x10xf32>
    %192 = vector.shape_cast %191 : vector<2x10xf32> to vector<2x1x10xf32>
    %193 = math.log %192 : vector<2x1x10xf32>
    %194 = vector.broadcast %193 : vector<2x1x10xf32> to vector<2x8x10xf32>
    %195 = arith.subf %189, %194 : vector<2x8x10xf32>
    %c0_39 = arith.constant 0 : index
    %c0_40 = arith.constant 0 : index
    %c0_41 = arith.constant 0 : index
    %196 = vector.load %arg8[%c0_39, %c0_40, %c0_41] : memref<2x8x10xf32, #tpu.memory_space<vmem>>, vector<2x8x10xf32>
    tpu.vector_store %arg8[%c0_39, %c0_40, %c0_41], %195 {strides = array<i32>} : memref<2x8x10xf32, #tpu.memory_space<vmem>>, vector<2x8x10xf32>,
    return
  }
}

</mosaic_0001>

<llo_original>
// kernel: rnn_model_forward.1
$region0: #{rnn_model_forward.1}
  #allocation0 [shape = 'u32[]', space=smem, size = 0x4, offset = 0x4, fixed_abs, tag = 'smem constant byte address 0x4 - core index']
  #allocation1 [shape = 'u32[144,128]{1,0:T(1,128)}', space=vmem, size = 0x12000, scoped, tag = 'internal scratch']
  %s0 = inlined_call_operand.vmem [shape: f32[8,2,32], index: 0, kind: input, shape index: {}]
  %s1 = inlined_call_operand.vmem [shape: f32[32,128], index: 1, kind: input, shape index: {}]
  %s2 = inlined_call_operand.hbm [shape: f32[32,128], index: 2, kind: input, shape index: {}]
  %s3 = inlined_call_operand.vmem [shape: f32[1,128], index: 3, kind: input, shape index: {}]
  %s4 = inlined_call_operand.hbm [shape: f32[32,32], index: 4, kind: input, shape index: {}]
  %s5 = inlined_call_operand.vmem [shape: f32[1,32], index: 5, kind: input, shape index: {}]
  %s6 = inlined_call_operand.vmem [shape: f32[32,10], index: 6, kind: input, shape index: {}]
  %s7 = inlined_call_operand.vmem [shape: f32[1,10], index: 7, kind: input, shape index: {}]
  %s8 = inlined_call_operand.hbm [shape: f32[2,8,10], index: 8, kind: output, shape index: {}]
  %s9 = sld [smem:[#allocation0]]
  $region50: #{rnn_model_forward.1} parent=0
    _
  %s11 = ssub.s32 1, %s9
  %s12 = scalar_select 0, %s11, %s9
  $region1: #{rnn_model_forward.1} parent=0
    #allocation2 [shape = 'u8[16384]{0}', space=vmem, size = 0x4000, scoped, tag = 'input window, operand 2, single buffered']
    #allocation3 [shape = 's32[1]{0}', space=sflag, size = 0x4, scoped, tag = 'scoped memory for rnn_model_forward.1']
    #allocation4 [shape = 's32[1]{0}', space=sflag, size = 0x4, scoped, tag = 'scoped memory for rnn_model_forward.1']
    #allocation5 [shape = 'u8[16384]{0}', space=vmem, size = 0x4000, scoped, tag = 'input window, operand 4, single buffered']
    #allocation6 [shape = 's32[1]{0}', space=sflag, size = 0x4, scoped, tag = 'scoped memory for rnn_model_forward.1']
    #allocation7 [shape = 'u8[8192]{0}', space=vmem, size = 0x2000, scoped, tag = 'output window, operand 0, single buffered']
    %13 = vsyncpa [#allocation3], 0
    %14 = vsyncpa [#allocation6], 0
    %15 = vsyncpa [#allocation4], 0
    // Predicated region
    $region2: #{rnn_model_forward.1} parent=1 // pred_check
      _
    $region3: #{rnn_model_forward.1} parent=1 // pred_check_branch
      %17 = sbr.rel (0) target = $region5
    $region4: #{rnn_model_forward.1} parent=1 // pred_region
      _
    $region5: #{rnn_model_forward.1} parent=1 // pred_fallthru
      _
    // Predicated region
    $region6: #{rnn_model_forward.1} parent=1 // pred_check
      _
    $region7: #{rnn_model_forward.1} parent=1 // pred_check_branch
      %19 = sbr.rel (0) target = $region9
    $region8: #{rnn_model_forward.1} parent=1 // pred_region
      _
    $region9: #{rnn_model_forward.1} parent=1 // pred_fallthru
      _
    // Predicated region
    $region10: #{rnn_model_forward.1} parent=1 // pred_check
      _
    $region11: #{rnn_model_forward.1} parent=1 // pred_check_branch
      %21 = sbr.rel (0) target = $region13
    $region12: #{rnn_model_forward.1} parent=1 // pred_region
      %s23 = ssub.s32 512, 512
      %24 = vsyncadd [#allocation3], %s23
      %s25 = sshll.u32 [#allocation2], 4
      %s26 = int_to_ptr.vmem [resolvable:$true] %s25
      %31 = dma.hbm_to_vmem [thread:$0]  %s2, 512, %s26, [#allocation3], 128, 128, 8
    $region13: #{rnn_model_forward.1} parent=1 // pred_fallthru
      _
    // Predicated region
    $region14: #{rnn_model_forward.1} parent=1 // pred_check
      _
    $region15: #{rnn_model_forward.1} parent=1 // pred_check_branch
      %33 = sbr.rel (0) target = $region17
    $region16: #{rnn_model_forward.1} parent=1 // pred_region
      _
    $region17: #{rnn_model_forward.1} parent=1 // pred_fallthru
      _
    // Predicated region
    $region18: #{rnn_model_forward.1} parent=1 // pred_check
      _
    $region19: #{rnn_model_forward.1} parent=1 // pred_check_branch
      %35 = sbr.rel (0) target = $region21
    $region20: #{rnn_model_forward.1} parent=1 // pred_region
      %s37 = ssub.s32 512, 512
      %38 = vsyncadd [#allocation6], %s37
      %s39 = sshll.u32 [#allocation5], 4
      %s40 = int_to_ptr.vmem [resolvable:$true] %s39
      %45 = dma.hbm_to_vmem [thread:$0]  %s4, 512, %s40, [#allocation6], 128, 128, 8
    $region21: #{rnn_model_forward.1} parent=1 // pred_fallthru
      _
    // Predicated region
    $region22: #{rnn_model_forward.1} parent=1 // pred_check
      _
    $region23: #{rnn_model_forward.1} parent=1 // pred_check_branch
      %47 = sbr.rel (0) target = $region25
    $region24: #{rnn_model_forward.1} parent=1 // pred_region
      _
    $region25: #{rnn_model_forward.1} parent=1 // pred_fallthru
      _
    // Predicated region
    $region26: #{rnn_model_forward.1} parent=1 // pred_check
      _
    $region27: #{rnn_model_forward.1} parent=1 // pred_check_branch
      %49 = sbr.rel (0) target = $region29
    $region28: #{rnn_model_forward.1} parent=1 // pred_region
      _
    $region29: #{rnn_model_forward.1} parent=1 // pred_fallthru
      _
    // Predicated region
    $region30: #{rnn_model_forward.1} parent=1 // pred_check
      _
    $region31: #{rnn_model_forward.1} parent=1 // pred_check_branch
      %51 = sbr.rel (0) target = $region33
    $region32: #{rnn_model_forward.1} parent=1 // pred_region
      _
    $region33: #{rnn_model_forward.1} parent=1 // pred_fallthru
      _
    // Predicated region
    $region34: #{rnn_model_forward.1} parent=1 // pred_check
      _
    $region35: #{rnn_model_forward.1} parent=1 // pred_check_branch
      %53 = sbr.rel (0) target = $region37
    $region36: #{rnn_model_forward.1} parent=1 // pred_region
      %54 = dma.done [#allocation3], 512
    $region37: #{rnn_model_forward.1} parent=1 // pred_fallthru
      _
    // Predicated region
    $region38: #{rnn_model_forward.1} parent=1 // pred_check
      _
    $region39: #{rnn_model_forward.1} parent=1 // pred_check_branch
      %56 = sbr.rel (0) target = $region41
    $region40: #{rnn_model_forward.1} parent=1 // pred_region
      %57 = dma.done [#allocation6], 512
    $region41: #{rnn_model_forward.1} parent=1 // pred_fallthru
      _
    %v58 = vld [vmem:[%s0] sm:$0x3]
    %v59 = vld [vmem:[%s0 + $0x2] sm:$0x3]
    %v60 = vld [vmem:[%s0 + $0x4] sm:$0x3]
    %v61 = vld [vmem:[%s0 + $0x6] sm:$0x3]
    %v62 = vld [vmem:[%s0 + $0x8] sm:$0x3]
    %v63 = vld [vmem:[%s0 + $0xa] sm:$0x3]
    %v64 = vld [vmem:[%s0 + $0xc] sm:$0x3]
    %v65 = vld [vmem:[%s0 + $0xe] sm:$0x3]
    %v66 = vld [vmem:[%s1] sm:$0xff]
    %v67 = vld [vmem:[%s1 + $0x8] sm:$0xff]
    %v68 = vld [vmem:[%s1 + $0x10] sm:$0xff]
    %v69 = vld [vmem:[%s1 + $0x18] sm:$0xff]
    %v70 = vld [vmem:[%s3] sm:$0x1]
    %v72 = vlaneseq
    %v73 = vshrl.u32 %v72, 7
    %v74 = vsub.s32 0, %v73
    %v75 = vrot.slane %v70, %v74
    %v85 = vcombine.low %v58, %v59
    %v86 = vcombine.low %v60, %v61
    %v88 = vunpack.c.l.s4 1983009808
    %v89 = vunpack.c.0.s8 %v88
    %v90 = vlaneseq
    %v91 = vshrl.u32 %v90, 7
    %v92 = vsub.s32 %v89, %v91
    %v93 = vrot.slane %v85, %v92
    %v95 = vunpack.c.l.s4 1983009808
    %v96 = vunpack.c.0.s8 %v95
    %v97 = vlaneseq
    %v98 = vshrl.u32 %v97, 7
    %v99 = vsub.s32 %v96, %v98
    %v100 = vrot.slane %v86, %v99
    %v101 = vcombine.low %v93, %v100
    %v102 = vcombine.low %v62, %v63
    %v103 = vcombine.low %v64, %v65
    %v105 = vunpack.c.l.s4 1983009808
    %v106 = vunpack.c.0.s8 %v105
    %v107 = vlaneseq
    %v108 = vshrl.u32 %v107, 7
    %v109 = vsub.s32 %v106, %v108
    %v110 = vrot.slane %v102, %v109
    %v112 = vunpack.c.l.s4 1983009808
    %v113 = vunpack.c.0.s8 %v112
    %v114 = vlaneseq
    %v115 = vshrl.u32 %v114, 7
    %v116 = vsub.s32 %v113, %v115
    %v117 = vrot.slane %v103, %v116
    %v118 = vcombine.low %v110, %v117
    %vm119 = vcmask 261120
    %v120 = vsel %vm119, %v101, 0
    %v122 = vsel %vm119, %v118, 0
    %124 = vmatprep.subr.mxu0 0.0
    %125 = vmatpush1.msra.mxu0 %v66
    %126 = vmatprep.subr.mxu0 0.0
    %127 = vmatpush1.msra.mxu0 %v67
    %128 = vmatprep.subr.mxu0 0.0
    %129 = vmatpush1.msra.mxu0 %v68
    %130 = vmatprep.subr.mxu0 0.0
    %131 = vmatpush1.msra.mxu0 %v69
    %132 = vmatprep.subr.mxu0 0.0
    %133 = vmatpush1.msra.mxu0 0.0
    %134 = vmatprep.subr.mxu0 0.0
    %135 = vmatpush1.msra.mxu0 0.0
    %136 = vmatprep.subr.mxu0 0.0
    %137 = vmatpush1.msra.mxu0 0.0
    %138 = vmatprep.subr.mxu0 0.0
    %139 = vmatpush1.msra.mxu0 0.0
    %140 = vmatprep.subr.mxu0 0.0
    %141 = vmatpush1.msra.mxu0 0.0
    %142 = vmatprep.subr.mxu0 0.0
    %143 = vmatpush1.msra.mxu0 0.0
    %144 = vmatprep.subr.mxu0 0.0
    %145 = vmatpush1.msra.mxu0 0.0
    %146 = vmatprep.subr.mxu0 0.0
    %147 = vmatpush1.msra.mxu0 0.0
    %148 = vmatprep.subr.mxu0 0.0
    %149 = vmatpush1.msra.mxu0 0.0
    %150 = vmatprep.subr.mxu0 0.0
    %151 = vmatpush1.msra.mxu0 0.0
    %152 = vmatprep.subr.mxu0 0.0
    %153 = vmatpush1.msra.mxu0 0.0
    %154 = vmatprep.subr.mxu0 0.0
    %155 = vmatpush1.msra.mxu0 0.0
    %156 = vmatprep.subr.mxu0 0.0
    %157 = vmatpush1.msra.mxu0 0.0
    %158 = vmatprep.subr.mxu0 0.0
    %159 = vmatpush1.msra.mxu0 0.0
    %160 = vmatprep.subr.mxu0 0.0
    %161 = vmatpush1.msra.mxu0 0.0
    %162 = vmatprep.subr.mxu0 0.0
    %163 = vmatpush1.msra.mxu0 0.0
    %164 = vmatprep.subr.mxu0 0.0
    %165 = vmatpush1.msra.mxu0 0.0
    %166 = vmatprep.subr.mxu0 0.0
    %167 = vmatpush1.msra.mxu0 0.0
    %168 = vmatprep.subr.mxu0 0.0
    %169 = vmatpush1.msra.mxu0 0.0
    %170 = vmatprep.subr.mxu0 0.0
    %171 = vmatpush1.msra.mxu0 0.0
    %172 = vmatprep.subr.mxu0 0.0
    %173 = vmatpush1.msra.mxu0 0.0
    %174 = vmatprep.subr.mxu0 0.0
    %175 = vmatpush1.msra.mxu0 0.0
    %176 = vmatprep.subr.mxu0 0.0
    %177 = vmatpush1.msra.mxu0 0.0
    %178 = vmatprep.subr.mxu0 0.0
    %179 = vmatpush1.msra.mxu0 0.0
    %180 = vmatprep.subr.mxu0 0.0
    %181 = vmatpush1.msra.mxu0 0.0
    %182 = vmatprep.subr.mxu0 0.0
    %183 = vmatpush1.msra.mxu0 0.0
    %184 = vmatprep.subr.mxu0 0.0
    %185 = vmatpush1.msra.mxu0 0.0
    %186 = vmatprep.subr.mxu0 0.0
    %187 = vmatpush1.msra.mxu0 0.0
    %188 = vmatprep.mubr.f32.mxu0 0.0
    %189 = vmatmul.mubr.f32.gmra.mrb[0].mxu0 %v120
    %v190 = vpop.f32.mrb[0].mxu0
    %v191 = vadd.f32 %v75, %v190
    %v192 = vpop.f32.mrb[0].mxu0
    %193 = vmatprep.mubr.f32.mxu0 0.0
    %194 = vmatmul.mubr.f32.gmra.mrb[0].mxu0 %v122
    %v195 = vpop.f32.mrb[0].mxu0
    %v196 = vadd.f32 %v75, %v195
    %v197 = vpop.f32.mrb[0].mxu0
    %198 = vdwg.mxu0
    %v201 = vcombine.high %v191, %v191
    %v203 = vunpack.c.l.s4 1983009808
    %v204 = vunpack.c.0.s8 %v203
    %v205 = vlaneseq
    %v206 = vshrl.u32 %v205, 7
    %v207 = vsub.s32 %v204, %v206
    %v208 = vrot.slane %v191, %v207
    %v210 = vunpack.c.l.s4 1983009808
    %v211 = vunpack.c.0.s8 %v210
    %v212 = vlaneseq
    %v213 = vshrl.u32 %v212, 7
    %v214 = vsub.s32 %v211, %v213
    %v215 = vrot.slane %v201, %v214
    %v216 = vcombine.high %v208, %v208
    %v217 = vcombine.high %v215, %v215
    %v218 = vcombine.high %v196, %v196
    %v220 = vunpack.c.l.s4 1983009808
    %v221 = vunpack.c.0.s8 %v220
    %v222 = vlaneseq
    %v223 = vshrl.u32 %v222, 7
    %v224 = vsub.s32 %v221, %v223
    %v225 = vrot.slane %v196, %v224
    %v227 = vunpack.c.l.s4 1983009808
    %v228 = vunpack.c.0.s8 %v227
    %v229 = vlaneseq
    %v230 = vshrl.u32 %v229, 7
    %v231 = vsub.s32 %v228, %v230
    %v232 = vrot.slane %v218, %v231
    %v233 = vcombine.high %v225, %v225
    %v234 = vcombine.high %v232, %v232
    %v243 = vld [vmem:[#allocation2] sm:$0xff]
    %v244 = vld [vmem:[#allocation2 + $0x8] sm:$0xff]
    %v245 = vld [vmem:[#allocation2 + $0x10] sm:$0xff]
    %v246 = vld [vmem:[#allocation2 + $0x18] sm:$0xff]
    %v248 = vsel %vm119, 0.0, 0
    %250 = vmatprep.subr.mxu0 0.0
    %251 = vmatpush1.msra.mxu0 %v243
    %252 = vmatprep.subr.mxu0 0.0
    %253 = vmatpush1.msra.mxu0 %v244
    %254 = vmatprep.subr.mxu0 0.0
    %255 = vmatpush1.msra.mxu0 %v245
    %256 = vmatprep.subr.mxu0 0.0
    %257 = vmatpush1.msra.mxu0 %v246
    %258 = vmatprep.subr.mxu0 0.0
    %259 = vmatpush1.msra.mxu0 0.0
    %260 = vmatprep.subr.mxu0 0.0
    %261 = vmatpush1.msra.mxu0 0.0
    %262 = vmatprep.subr.mxu0 0.0
    %263 = vmatpush1.msra.mxu0 0.0
    %264 = vmatprep.subr.mxu0 0.0
    %265 = vmatpush1.msra.mxu0 0.0
    %266 = vmatprep.subr.mxu0 0.0
    %267 = vmatpush1.msra.mxu0 0.0
    %268 = vmatprep.subr.mxu0 0.0
    %269 = vmatpush1.msra.mxu0 0.0
    %270 = vmatprep.subr.mxu0 0.0
    %271 = vmatpush1.msra.mxu0 0.0
    %272 = vmatprep.subr.mxu0 0.0
    %273 = vmatpush1.msra.mxu0 0.0
    %274 = vmatprep.subr.mxu0 0.0
    %275 = vmatpush1.msra.mxu0 0.0
    %276 = vmatprep.subr.mxu0 0.0
    %277 = vmatpush1.msra.mxu0 0.0
    %278 = vmatprep.subr.mxu0 0.0
    %279 = vmatpush1.msra.mxu0 0.0
    %280 = vmatprep.subr.mxu0 0.0
    %281 = vmatpush1.msra.mxu0 0.0
    %282 = vmatprep.subr.mxu0 0.0
    %283 = vmatpush1.msra.mxu0 0.0
    %284 = vmatprep.subr.mxu0 0.0
    %285 = vmatpush1.msra.mxu0 0.0
    %286 = vmatprep.subr.mxu0 0.0
    %287 = vmatpush1.msra.mxu0 0.0
    %288 = vmatprep.subr.mxu0 0.0
    %289 = vmatpush1.msra.mxu0 0.0
    %290 = vmatprep.subr.mxu0 0.0
    %291 = vmatpush1.msra.mxu0 0.0
    %292 = vmatprep.subr.mxu0 0.0
    %293 = vmatpush1.msra.mxu0 0.0
    %294 = vmatprep.subr.mxu0 0.0
    %295 = vmatpush1.msra.mxu0 0.0
    %296 = vmatprep.subr.mxu0 0.0
    %297 = vmatpush1.msra.mxu0 0.0
    %298 = vmatprep.subr.mxu0 0.0
    %299 = vmatpush1.msra.mxu0 0.0
    %300 = vmatprep.subr.mxu0 0.0
    %301 = vmatpush1.msra.mxu0 0.0
    %302 = vmatprep.subr.mxu0 0.0
    %303 = vmatpush1.msra.mxu0 0.0
    %304 = vmatprep.subr.mxu0 0.0
    %305 = vmatpush1.msra.mxu0 0.0
    %306 = vmatprep.subr.mxu0 0.0
    %307 = vmatpush1.msra.mxu0 0.0
    %308 = vmatprep.subr.mxu0 0.0
    %309 = vmatpush1.msra.mxu0 0.0
    %310 = vmatprep.subr.mxu0 0.0
    %311 = vmatpush1.msra.mxu0 0.0
    %312 = vmatprep.subr.mxu0 0.0
    %313 = vmatpush1.msra.mxu0 0.0
    %314 = vmatprep.mubr.f32.mxu0 0.0
    %315 = vmatmul.mubr.f32.gmra.mrb[0].mxu0 %v248
    %v316 = vpop.f32.mrb[0].mxu0
    %v317 = vadd.f32 %v208, %v316
    %v318 = vpop.f32.mrb[0].mxu0
    %319 = vdwg.mxu0
    %v320 = vxor.u32 %v317, 2147483648
    %v321 = vmul.f32 %v320, 1.442695
    %v322 = vpow.pop %v321
    %v323 = vadd.f32 %v322, 1.0
    %v324 = vrcp.pop %v323
    %v325 = vmul.f32 1.0, %v324
    %v326 = vtanh.pop %v317
    %v327 = vmul.f32 %v325, 0.0
    %329 = vrot.lane.b32.xlu0 %v326, 64
    %v330 = vpop.permute.xlu0 %329
    %v332 = vmul.f32 %v325, %v330
    %334 = vrot.lane.b32.xlu0 %v332, 32
    %v335 = vpop.permute.xlu0 %334
    %v337 = vadd.f32 %v327, %v335
    %v338 = vtanh.pop %v337
    %340 = vrot.lane.b32.xlu0 %v338, 64
    %v341 = vpop.permute.xlu0 %340
    %v343 = vmul.f32 %v325, %v341
    %345 = vrot.lane.b32.xlu0 %v343, 32
    %v346 = vpop.permute.xlu0 %345
    %v347 = vsel %vm119, %v346, 0
    %349 = vmatprep.subr.mxu0 0.0
    %350 = vmatpush1.msra.mxu0 %v243
    %351 = vmatprep.subr.mxu0 0.0
    %352 = vmatpush1.msra.mxu0 %v244
    %353 = vmatprep.subr.mxu0 0.0
    %354 = vmatpush1.msra.mxu0 %v245
    %355 = vmatprep.subr.mxu0 0.0
    %356 = vmatpush1.msra.mxu0 %v246
    %357 = vmatprep.subr.mxu0 0.0
    %358 = vmatpush1.msra.mxu0 0.0
    %359 = vmatprep.subr.mxu0 0.0
    %360 = vmatpush1.msra.mxu0 0.0
    %361 = vmatprep.subr.mxu0 0.0
    %362 = vmatpush1.msra.mxu0 0.0
    %363 = vmatprep.subr.mxu0 0.0
    %364 = vmatpush1.msra.mxu0 0.0
    %365 = vmatprep.subr.mxu0 0.0
    %366 = vmatpush1.msra.mxu0 0.0
    %367 = vmatprep.subr.mxu0 0.0
    %368 = vmatpush1.msra.mxu0 0.0
    %369 = vmatprep.subr.mxu0 0.0
    %370 = vmatpush1.msra.mxu0 0.0
    %371 = vmatprep.subr.mxu0 0.0
    %372 = vmatpush1.msra.mxu0 0.0
    %373 = vmatprep.subr.mxu0 0.0
    %374 = vmatpush1.msra.mxu0 0.0
    %375 = vmatprep.subr.mxu0 0.0
    %376 = vmatpush1.msra.mxu0 0.0
    %377 = vmatprep.subr.mxu0 0.0
    %378 = vmatpush1.msra.mxu0 0.0
    %379 = vmatprep.subr.mxu0 0.0
    %380 = vmatpush1.msra.mxu0 0.0
    %381 = vmatprep.subr.mxu0 0.0
    %382 = vmatpush1.msra.mxu0 0.0
    %383 = vmatprep.subr.mxu0 0.0
    %384 = vmatpush1.msra.mxu0 0.0
    %385 = vmatprep.subr.mxu0 0.0
    %386 = vmatpush1.msra.mxu0 0.0
    %387 = vmatprep.subr.mxu0 0.0
    %388 = vmatpush1.msra.mxu0 0.0
    %389 = vmatprep.subr.mxu0 0.0
    %390 = vmatpush1.msra.mxu0 0.0
    %391 = vmatprep.subr.mxu0 0.0
    %392 = vmatpush1.msra.mxu0 0.0
    %393 = vmatprep.subr.mxu0 0.0
    %394 = vmatpush1.msra.mxu0 0.0
    %395 = vmatprep.subr.mxu0 0.0
    %396 = vmatpush1.msra.mxu0 0.0
    %397 = vmatprep.subr.mxu0 0.0
    %398 = vmatpush1.msra.mxu0 0.0
    %399 = vmatprep.subr.mxu0 0.0
    %400 = vmatpush1.msra.mxu0 0.0
    %401 = vmatprep.subr.mxu0 0.0
    %402 = vmatpush1.msra.mxu0 0.0
    %403 = vmatprep.subr.mxu0 0.0
    %404 = vmatpush1.msra.mxu0 0.0
    %405 = vmatprep.subr.mxu0 0.0
    %406 = vmatpush1.msra.mxu0 0.0
    %407 = vmatprep.subr.mxu0 0.0
    %408 = vmatpush1.msra.mxu0 0.0
    %409 = vmatprep.subr.mxu0 0.0
    %410 = vmatpush1.msra.mxu0 0.0
    %411 = vmatprep.subr.mxu0 0.0
    %412 = vmatpush1.msra.mxu0 0.0
    %413 = vmatprep.mubr.f32.mxu0 0.0
    %414 = vmatmul.mubr.f32.gmra.mrb[0].mxu0 %v347
    %v415 = vpop.f32.mrb[0].mxu0
    %v416 = vadd.f32 %v216, %v415
    %v417 = vpop.f32.mrb[0].mxu0
    %418 = vdwg.mxu0
    %v419 = vxor.u32 %v416, 2147483648
    %v420 = vmul.f32 %v419, 1.442695
    %v421 = vpow.pop %v420
    %v422 = vadd.f32 %v421, 1.0
    %v423 = vrcp.pop %v422
    %v424 = vmul.f32 1.0, %v423
    %v425 = vtanh.pop %v416
    %v426 = vmul.f32 %v424, %v337
    %428 = vrot.lane.b32.xlu0 %v425, 64
    %v429 = vpop.permute.xlu0 %428
    %v431 = vmul.f32 %v424, %v429
    %433 = vrot.lane.b32.xlu0 %v431, 32
    %v434 = vpop.permute.xlu0 %433
    %v436 = vadd.f32 %v426, %v434
    %v437 = vtanh.pop %v436
    %439 = vrot.lane.b32.xlu0 %v437, 64
    %v440 = vpop.permute.xlu0 %439
    %v442 = vmul.f32 %v424, %v440
    %444 = vrot.lane.b32.xlu0 %v442, 32
    %v445 = vpop.permute.xlu0 %444
    %v446 = vsel %vm119, %v445, 0
    %448 = vmatprep.subr.mxu0 0.0
    %449 = vmatpush1.msra.mxu0 %v243
    %450 = vmatprep.subr.mxu0 0.0
    %451 = vmatpush1.msra.mxu0 %v244
    %452 = vmatprep.subr.mxu0 0.0
    %453 = vmatpush1.msra.mxu0 %v245
    %454 = vmatprep.subr.mxu0 0.0
    %455 = vmatpush1.msra.mxu0 %v246
    %456 = vmatprep.subr.mxu0 0.0
    %457 = vmatpush1.msra.mxu0 0.0
    %458 = vmatprep.subr.mxu0 0.0
    %459 = vmatpush1.msra.mxu0 0.0
    %460 = vmatprep.subr.mxu0 0.0
    %461 = vmatpush1.msra.mxu0 0.0
    %462 = vmatprep.subr.mxu0 0.0
    %463 = vmatpush1.msra.mxu0 0.0
    %464 = vmatprep.subr.mxu0 0.0
    %465 = vmatpush1.msra.mxu0 0.0
    %466 = vmatprep.subr.mxu0 0.0
    %467 = vmatpush1.msra.mxu0 0.0
    %468 = vmatprep.subr.mxu0 0.0
    %469 = vmatpush1.msra.mxu0 0.0
    %470 = vmatprep.subr.mxu0 0.0
    %471 = vmatpush1.msra.mxu0 0.0
    %472 = vmatprep.subr.mxu0 0.0
    %473 = vmatpush1.msra.mxu0 0.0
    %474 = vmatprep.subr.mxu0 0.0
    %475 = vmatpush1.msra.mxu0 0.0
    %476 = vmatprep.subr.mxu0 0.0
    %477 = vmatpush1.msra.mxu0 0.0
    %478 = vmatprep.subr.mxu0 0.0
    %479 = vmatpush1.msra.mxu0 0.0
    %480 = vmatprep.subr.mxu0 0.0
    %481 = vmatpush1.msra.mxu0 0.0
    %482 = vmatprep.subr.mxu0 0.0
    %483 = vmatpush1.msra.mxu0 0.0
    %484 = vmatprep.subr.mxu0 0.0
    %485 = vmatpush1.msra.mxu0 0.0
    %486 = vmatprep.subr.mxu0 0.0
    %487 = vmatpush1.msra.mxu0 0.0
    %488 = vmatprep.subr.mxu0 0.0
    %489 = vmatpush1.msra.mxu0 0.0
    %490 = vmatprep.subr.mxu0 0.0
    %491 = vmatpush1.msra.mxu0 0.0
    %492 = vmatprep.subr.mxu0 0.0
    %493 = vmatpush1.msra.mxu0 0.0
    %494 = vmatprep.subr.mxu0 0.0
    %495 = vmatpush1.msra.mxu0 0.0
    %496 = vmatprep.subr.mxu0 0.0
    %497 = vmatpush1.msra.mxu0 0.0
    %498 = vmatprep.subr.mxu0 0.0
    %499 = vmatpush1.msra.mxu0 0.0
    %500 = vmatprep.subr.mxu0 0.0
    %501 = vmatpush1.msra.mxu0 0.0
    %502 = vmatprep.subr.mxu0 0.0
    %503 = vmatpush1.msra.mxu0 0.0
    %504 = vmatprep.subr.mxu0 0.0
    %505 = vmatpush1.msra.mxu0 0.0
    %506 = vmatprep.subr.mxu0 0.0
    %507 = vmatpush1.msra.mxu0 0.0
    %508 = vmatprep.subr.mxu0 0.0
    %509 = vmatpush1.msra.mxu0 0.0
    %510 = vmatprep.subr.mxu0 0.0
    %511 = vmatpush1.msra.mxu0 0.0
    %512 = vmatprep.mubr.f32.mxu0 0.0
    %513 = vmatmul.mubr.f32.gmra.mrb[0].mxu0 %v446
    %v514 = vpop.f32.mrb[0].mxu0
    %v515 = vadd.f32 %v215, %v514
    %v516 = vpop.f32.mrb[0].mxu0
    %517 = vdwg.mxu0
    %v518 = vxor.u32 %v515, 2147483648
    %v519 = vmul.f32 %v518, 1.442695
    %v520 = vpow.pop %v519
    %v521 = vadd.f32 %v520, 1.0
    %v522 = vrcp.pop %v521
    %v523 = vmul.f32 1.0, %v522
    %v524 = vtanh.pop %v515
    %v525 = vmul.f32 %v523, %v436
    %527 = vrot.lane.b32.xlu0 %v524, 64
    %v528 = vpop.permute.xlu0 %527
    %v530 = vmul.f32 %v523, %v528
    %532 = vrot.lane.b32.xlu0 %v530, 32
    %v533 = vpop.permute.xlu0 %532
    %v535 = vadd.f32 %v525, %v533
    %v536 = vtanh.pop %v535
    %538 = vrot.lane.b32.xlu0 %v536, 64
    %v539 = vpop.permute.xlu0 %538
    %v541 = vmul.f32 %v523, %v539
    %543 = vrot.lane.b32.xlu0 %v541, 32
    %v544 = vpop.permute.xlu0 %543
    %v545 = vsel %vm119, %v544, 0
    %547 = vmatprep.subr.mxu0 0.0
    %548 = vmatpush1.msra.mxu0 %v243
    %549 = vmatprep.subr.mxu0 0.0
    %550 = vmatpush1.msra.mxu0 %v244
    %551 = vmatprep.subr.mxu0 0.0
    %552 = vmatpush1.msra.mxu0 %v245
    %553 = vmatprep.subr.mxu0 0.0
    %554 = vmatpush1.msra.mxu0 %v246
    %555 = vmatprep.subr.mxu0 0.0
    %556 = vmatpush1.msra.mxu0 0.0
    %557 = vmatprep.subr.mxu0 0.0
    %558 = vmatpush1.msra.mxu0 0.0
    %559 = vmatprep.subr.mxu0 0.0
    %560 = vmatpush1.msra.mxu0 0.0
    %561 = vmatprep.subr.mxu0 0.0
    %562 = vmatpush1.msra.mxu0 0.0
    %563 = vmatprep.subr.mxu0 0.0
    %564 = vmatpush1.msra.mxu0 0.0
    %565 = vmatprep.subr.mxu0 0.0
    %566 = vmatpush1.msra.mxu0 0.0
    %567 = vmatprep.subr.mxu0 0.0
    %568 = vmatpush1.msra.mxu0 0.0
    %569 = vmatprep.subr.mxu0 0.0
    %570 = vmatpush1.msra.mxu0 0.0
    %571 = vmatprep.subr.mxu0 0.0
    %572 = vmatpush1.msra.mxu0 0.0
    %573 = vmatprep.subr.mxu0 0.0
    %574 = vmatpush1.msra.mxu0 0.0
    %575 = vmatprep.subr.mxu0 0.0
    %576 = vmatpush1.msra.mxu0 0.0
    %577 = vmatprep.subr.mxu0 0.0
    %578 = vmatpush1.msra.mxu0 0.0
    %579 = vmatprep.subr.mxu0 0.0
    %580 = vmatpush1.msra.mxu0 0.0
    %581 = vmatprep.subr.mxu0 0.0
    %582 = vmatpush1.msra.mxu0 0.0
    %583 = vmatprep.subr.mxu0 0.0
    %584 = vmatpush1.msra.mxu0 0.0
    %585 = vmatprep.subr.mxu0 0.0
    %586 = vmatpush1.msra.mxu0 0.0
    %587 = vmatprep.subr.mxu0 0.0
    %588 = vmatpush1.msra.mxu0 0.0
    %589 = vmatprep.subr.mxu0 0.0
    %590 = vmatpush1.msra.mxu0 0.0
    %591 = vmatprep.subr.mxu0 0.0
    %592 = vmatpush1.msra.mxu0 0.0
    %593 = vmatprep.subr.mxu0 0.0
    %594 = vmatpush1.msra.mxu0 0.0
    %595 = vmatprep.subr.mxu0 0.0
    %596 = vmatpush1.msra.mxu0 0.0
    %597 = vmatprep.subr.mxu0 0.0
    %598 = vmatpush1.msra.mxu0 0.0
    %599 = vmatprep.subr.mxu0 0.0
    %600 = vmatpush1.msra.mxu0 0.0
    %601 = vmatprep.subr.mxu0 0.0
    %602 = vmatpush1.msra.mxu0 0.0
    %603 = vmatprep.subr.mxu0 0.0
    %604 = vmatpush1.msra.mxu0 0.0
    %605 = vmatprep.subr.mxu0 0.0
    %606 = vmatpush1.msra.mxu0 0.0
    %607 = vmatprep.subr.mxu0 0.0
    %608 = vmatpush1.msra.mxu0 0.0
    %609 = vmatprep.subr.mxu0 0.0
    %610 = vmatpush1.msra.mxu0 0.0
    %611 = vmatprep.mubr.f32.mxu0 0.0
    %612 = vmatmul.mubr.f32.gmra.mrb[0].mxu0 %v545
    %v613 = vpop.f32.mrb[0].mxu0
    %v614 = vadd.f32 %v217, %v613
    %v615 = vpop.f32.mrb[0].mxu0
    %616 = vdwg.mxu0
    %v617 = vxor.u32 %v614, 2147483648
    %v618 = vmul.f32 %v617, 1.442695
    %v619 = vpow.pop %v618
    %v620 = vadd.f32 %v619, 1.0
    %v621 = vrcp.pop %v620
    %v622 = vmul.f32 1.0, %v621
    %v623 = vtanh.pop %v614
    %v624 = vmul.f32 %v622, %v535
    %626 = vrot.lane.b32.xlu0 %v623, 64
    %v627 = vpop.permute.xlu0 %626
    %v629 = vmul.f32 %v622, %v627
    %631 = vrot.lane.b32.xlu0 %v629, 32
    %v632 = vpop.permute.xlu0 %631
    %v634 = vadd.f32 %v624, %v632
    %v635 = vtanh.pop %v634
    %637 = vrot.lane.b32.xlu0 %v635, 64
    %v638 = vpop.permute.xlu0 %637
    %v640 = vmul.f32 %v622, %v638
    %642 = vrot.lane.b32.xlu0 %v640, 32
    %v643 = vpop.permute.xlu0 %642
    %v644 = vsel %vm119, %v643, 0
    %646 = vmatprep.subr.mxu0 0.0
    %647 = vmatpush1.msra.mxu0 %v243
    %648 = vmatprep.subr.mxu0 0.0
    %649 = vmatpush1.msra.mxu0 %v244
    %650 = vmatprep.subr.mxu0 0.0
    %651 = vmatpush1.msra.mxu0 %v245
    %652 = vmatprep.subr.mxu0 0.0
    %653 = vmatpush1.msra.mxu0 %v246
    %654 = vmatprep.subr.mxu0 0.0
    %655 = vmatpush1.msra.mxu0 0.0
    %656 = vmatprep.subr.mxu0 0.0
    %657 = vmatpush1.msra.mxu0 0.0
    %658 = vmatprep.subr.mxu0 0.0
    %659 = vmatpush1.msra.mxu0 0.0
    %660 = vmatprep.subr.mxu0 0.0
    %661 = vmatpush1.msra.mxu0 0.0
    %662 = vmatprep.subr.mxu0 0.0
    %663 = vmatpush1.msra.mxu0 0.0
    %664 = vmatprep.subr.mxu0 0.0
    %665 = vmatpush1.msra.mxu0 0.0
    %666 = vmatprep.subr.mxu0 0.0
    %667 = vmatpush1.msra.mxu0 0.0
    %668 = vmatprep.subr.mxu0 0.0
    %669 = vmatpush1.msra.mxu0 0.0
    %670 = vmatprep.subr.mxu0 0.0
    %671 = vmatpush1.msra.mxu0 0.0
    %672 = vmatprep.subr.mxu0 0.0
    %673 = vmatpush1.msra.mxu0 0.0
    %674 = vmatprep.subr.mxu0 0.0
    %675 = vmatpush1.msra.mxu0 0.0
    %676 = vmatprep.subr.mxu0 0.0
    %677 = vmatpush1.msra.mxu0 0.0
    %678 = vmatprep.subr.mxu0 0.0
    %679 = vmatpush1.msra.mxu0 0.0
    %680 = vmatprep.subr.mxu0 0.0
    %681 = vmatpush1.msra.mxu0 0.0
    %682 = vmatprep.subr.mxu0 0.0
    %683 = vmatpush1.msra.mxu0 0.0
    %684 = vmatprep.subr.mxu0 0.0
    %685 = vmatpush1.msra.mxu0 0.0
    %686 = vmatprep.subr.mxu0 0.0
    %687 = vmatpush1.msra.mxu0 0.0
    %688 = vmatprep.subr.mxu0 0.0
    %689 = vmatpush1.msra.mxu0 0.0
    %690 = vmatprep.subr.mxu0 0.0
    %691 = vmatpush1.msra.mxu0 0.0
    %692 = vmatprep.subr.mxu0 0.0
    %693 = vmatpush1.msra.mxu0 0.0
    %694 = vmatprep.subr.mxu0 0.0
    %695 = vmatpush1.msra.mxu0 0.0
    %696 = vmatprep.subr.mxu0 0.0
    %697 = vmatpush1.msra.mxu0 0.0
    %698 = vmatprep.subr.mxu0 0.0
    %699 = vmatpush1.msra.mxu0 0.0
    %700 = vmatprep.subr.mxu0 0.0
    %701 = vmatpush1.msra.mxu0 0.0
    %702 = vmatprep.subr.mxu0 0.0
    %703 = vmatpush1.msra.mxu0 0.0
    %704 = vmatprep.subr.mxu0 0.0
    %705 = vmatpush1.msra.mxu0 0.0
    %706 = vmatprep.subr.mxu0 0.0
    %707 = vmatpush1.msra.mxu0 0.0
    %708 = vmatprep.subr.mxu0 0.0
    %709 = vmatpush1.msra.mxu0 0.0
    %710 = vmatprep.mubr.f32.mxu0 0.0
    %711 = vmatmul.mubr.f32.gmra.mrb[0].mxu0 %v644
    %v712 = vpop.f32.mrb[0].mxu0
    %v713 = vadd.f32 %v225, %v712
    %v714 = vpop.f32.mrb[0].mxu0
    %715 = vdwg.mxu0
    %v716 = vxor.u32 %v713, 2147483648
    %v717 = vmul.f32 %v716, 1.442695
    %v718 = vpow.pop %v717
    %v719 = vadd.f32 %v718, 1.0
    %v720 = vrcp.pop %v719
    %v721 = vmul.f32 1.0, %v720
    %v722 = vtanh.pop %v713
    %v723 = vmul.f32 %v721, %v634
    %725 = vrot.lane.b32.xlu0 %v722, 64
    %v726 = vpop.permute.xlu0 %725
    %v728 = vmul.f32 %v721, %v726
    %730 = vrot.lane.b32.xlu0 %v728, 32
    %v731 = vpop.permute.xlu0 %730
    %v733 = vadd.f32 %v723, %v731
    %v734 = vtanh.pop %v733
    %736 = vrot.lane.b32.xlu0 %v734, 64
    %v737 = vpop.permute.xlu0 %736
    %v739 = vmul.f32 %v721, %v737
    %741 = vrot.lane.b32.xlu0 %v739, 32
    %v742 = vpop.permute.xlu0 %741
    %v743 = vsel %vm119, %v742, 0
    %745 = vmatprep.subr.mxu0 0.0
    %746 = vmatpush1.msra.mxu0 %v243
    %747 = vmatprep.subr.mxu0 0.0
    %748 = vmatpush1.msra.mxu0 %v244
    %749 = vmatprep.subr.mxu0 0.0
    %750 = vmatpush1.msra.mxu0 %v245
    %751 = vmatprep.subr.mxu0 0.0
    %752 = vmatpush1.msra.mxu0 %v246
    %753 = vmatprep.subr.mxu0 0.0
    %754 = vmatpush1.msra.mxu0 0.0
    %755 = vmatprep.subr.mxu0 0.0
    %756 = vmatpush1.msra.mxu0 0.0
    %757 = vmatprep.subr.mxu0 0.0
    %758 = vmatpush1.msra.mxu0 0.0
    %759 = vmatprep.subr.mxu0 0.0
    %760 = vmatpush1.msra.mxu0 0.0
    %761 = vmatprep.subr.mxu0 0.0
    %762 = vmatpush1.msra.mxu0 0.0
    %763 = vmatprep.subr.mxu0 0.0
    %764 = vmatpush1.msra.mxu0 0.0
    %765 = vmatprep.subr.mxu0 0.0
    %766 = vmatpush1.msra.mxu0 0.0
    %767 = vmatprep.subr.mxu0 0.0
    %768 = vmatpush1.msra.mxu0 0.0
    %769 = vmatprep.subr.mxu0 0.0
    %770 = vmatpush1.msra.mxu0 0.0
    %771 = vmatprep.subr.mxu0 0.0
    %772 = vmatpush1.msra.mxu0 0.0
    %773 = vmatprep.subr.mxu0 0.0
    %774 = vmatpush1.msra.mxu0 0.0
    %775 = vmatprep.subr.mxu0 0.0
    %776 = vmatpush1.msra.mxu0 0.0
    %777 = vmatprep.subr.mxu0 0.0
    %778 = vmatpush1.msra.mxu0 0.0
    %779 = vmatprep.subr.mxu0 0.0
    %780 = vmatpush1.msra.mxu0 0.0
    %781 = vmatprep.subr.mxu0 0.0
    %782 = vmatpush1.msra.mxu0 0.0
    %783 = vmatprep.subr.mxu0 0.0
    %784 = vmatpush1.msra.mxu0 0.0
    %785 = vmatprep.subr.mxu0 0.0
    %786 = vmatpush1.msra.mxu0 0.0
    %787 = vmatprep.subr.mxu0 0.0
    %788 = vmatpush1.msra.mxu0 0.0
    %789 = vmatprep.subr.mxu0 0.0
    %790 = vmatpush1.msra.mxu0 0.0
    %791 = vmatprep.subr.mxu0 0.0
    %792 = vmatpush1.msra.mxu0 0.0
    %793 = vmatprep.subr.mxu0 0.0
    %794 = vmatpush1.msra.mxu0 0.0
    %795 = vmatprep.subr.mxu0 0.0
    %796 = vmatpush1.msra.mxu0 0.0
    %797 = vmatprep.subr.mxu0 0.0
    %798 = vmatpush1.msra.mxu0 0.0
    %799 = vmatprep.subr.mxu0 0.0
    %800 = vmatpush1.msra.mxu0 0.0
    %801 = vmatprep.subr.mxu0 0.0
    %802 = vmatpush1.msra.mxu0 0.0
    %803 = vmatprep.subr.mxu0 0.0
    %804 = vmatpush1.msra.mxu0 0.0
    %805 = vmatprep.subr.mxu0 0.0
    %806 = vmatpush1.msra.mxu0 0.0
    %807 = vmatprep.subr.mxu0 0.0
    %808 = vmatpush1.msra.mxu0 0.0
    %809 = vmatprep.mubr.f32.mxu0 0.0
    %810 = vmatmul.mubr.f32.gmra.mrb[0].mxu0 %v743
    %v811 = vpop.f32.mrb[0].mxu0
    %v812 = vadd.f32 %v233, %v811
    %v813 = vpop.f32.mrb[0].mxu0
    %814 = vdwg.mxu0
    %v815 = vxor.u32 %v812, 2147483648
    %v816 = vmul.f32 %v815, 1.442695
    %v817 = vpow.pop %v816
    %v818 = vadd.f32 %v817, 1.0
    %v819 = vrcp.pop %v818
    %v820 = vmul.f32 1.0, %v819
    %v821 = vtanh.pop %v812
    %v822 = vmul.f32 %v820, %v733
    %824 = vrot.lane.b32.xlu0 %v821, 64
    %v825 = vpop.permute.xlu0 %824
    %v827 = vmul.f32 %v820, %v825
    %829 = vrot.lane.b32.xlu0 %v827, 32
    %v830 = vpop.permute.xlu0 %829
    %v832 = vadd.f32 %v822, %v830
    %v833 = vtanh.pop %v832
    %835 = vrot.lane.b32.xlu0 %v833, 64
    %v836 = vpop.permute.xlu0 %835
    %v838 = vmul.f32 %v820, %v836
    %840 = vrot.lane.b32.xlu0 %v838, 32
    %v841 = vpop.permute.xlu0 %840
    %v842 = vsel %vm119, %v841, 0
    %844 = vmatprep.subr.mxu0 0.0
    %845 = vmatpush1.msra.mxu0 %v243
    %846 = vmatprep.subr.mxu0 0.0
    %847 = vmatpush1.msra.mxu0 %v244
    %848 = vmatprep.subr.mxu0 0.0
    %849 = vmatpush1.msra.mxu0 %v245
    %850 = vmatprep.subr.mxu0 0.0
    %851 = vmatpush1.msra.mxu0 %v246
    %852 = vmatprep.subr.mxu0 0.0
    %853 = vmatpush1.msra.mxu0 0.0
    %854 = vmatprep.subr.mxu0 0.0
    %855 = vmatpush1.msra.mxu0 0.0
    %856 = vmatprep.subr.mxu0 0.0
    %857 = vmatpush1.msra.mxu0 0.0
    %858 = vmatprep.subr.mxu0 0.0
    %859 = vmatpush1.msra.mxu0 0.0
    %860 = vmatprep.subr.mxu0 0.0
    %861 = vmatpush1.msra.mxu0 0.0
    %862 = vmatprep.subr.mxu0 0.0
    %863 = vmatpush1.msra.mxu0 0.0
    %864 = vmatprep.subr.mxu0 0.0
    %865 = vmatpush1.msra.mxu0 0.0
    %866 = vmatprep.subr.mxu0 0.0
    %867 = vmatpush1.msra.mxu0 0.0
    %868 = vmatprep.subr.mxu0 0.0
    %869 = vmatpush1.msra.mxu0 0.0
    %870 = vmatprep.subr.mxu0 0.0
    %871 = vmatpush1.msra.mxu0 0.0
    %872 = vmatprep.subr.mxu0 0.0
    %873 = vmatpush1.msra.mxu0 0.0
    %874 = vmatprep.subr.mxu0 0.0
    %875 = vmatpush1.msra.mxu0 0.0
    %876 = vmatprep.subr.mxu0 0.0
    %877 = vmatpush1.msra.mxu0 0.0
    %878 = vmatprep.subr.mxu0 0.0
    %879 = vmatpush1.msra.mxu0 0.0
    %880 = vmatprep.subr.mxu0 0.0
    %881 = vmatpush1.msra.mxu0 0.0
    %882 = vmatprep.subr.mxu0 0.0
    %883 = vmatpush1.msra.mxu0 0.0
    %884 = vmatprep.subr.mxu0 0.0
    %885 = vmatpush1.msra.mxu0 0.0
    %886 = vmatprep.subr.mxu0 0.0
    %887 = vmatpush1.msra.mxu0 0.0
    %888 = vmatprep.subr.mxu0 0.0
    %889 = vmatpush1.msra.mxu0 0.0
    %890 = vmatprep.subr.mxu0 0.0
    %891 = vmatpush1.msra.mxu0 0.0
    %892 = vmatprep.subr.mxu0 0.0
    %893 = vmatpush1.msra.mxu0 0.0
    %894 = vmatprep.subr.mxu0 0.0
    %895 = vmatpush1.msra.mxu0 0.0
    %896 = vmatprep.subr.mxu0 0.0
    %897 = vmatpush1.msra.mxu0 0.0
    %898 = vmatprep.subr.mxu0 0.0
    %899 = vmatpush1.msra.mxu0 0.0
    %900 = vmatprep.subr.mxu0 0.0
    %901 = vmatpush1.msra.mxu0 0.0
    %902 = vmatprep.subr.mxu0 0.0
    %903 = vmatpush1.msra.mxu0 0.0
    %904 = vmatprep.subr.mxu0 0.0
    %905 = vmatpush1.msra.mxu0 0.0
    %906 = vmatprep.subr.mxu0 0.0
    %907 = vmatpush1.msra.mxu0 0.0
    %908 = vmatprep.mubr.f32.mxu0 0.0
    %909 = vmatmul.mubr.f32.gmra.mrb[0].mxu0 %v842
    %v910 = vpop.f32.mrb[0].mxu0
    %v911 = vadd.f32 %v232, %v910
    %v912 = vpop.f32.mrb[0].mxu0
    %913 = vdwg.mxu0
    %v914 = vxor.u32 %v911, 2147483648
    %v915 = vmul.f32 %v914, 1.442695
    %v916 = vpow.pop %v915
    %v917 = vadd.f32 %v916, 1.0
    %v918 = vrcp.pop %v917
    %v919 = vmul.f32 1.0, %v918
    %v920 = vtanh.pop %v911
    %v921 = vmul.f32 %v919, %v832
    %923 = vrot.lane.b32.xlu0 %v920, 64
    %v924 = vpop.permute.xlu0 %923
    %v926 = vmul.f32 %v919, %v924
    %928 = vrot.lane.b32.xlu0 %v926, 32
    %v929 = vpop.permute.xlu0 %928
    %v931 = vadd.f32 %v921, %v929
    %v932 = vtanh.pop %v931
    %934 = vrot.lane.b32.xlu0 %v932, 64
    %v935 = vpop.permute.xlu0 %934
    %v937 = vmul.f32 %v919, %v935
    %939 = vrot.lane.b32.xlu0 %v937, 32
    %v940 = vpop.permute.xlu0 %939
    %v941 = vsel %vm119, %v940, 0
    %943 = vmatprep.subr.mxu0 0.0
    %944 = vmatpush1.msra.mxu0 %v243
    %945 = vmatprep.subr.mxu0 0.0
    %946 = vmatpush1.msra.mxu0 %v244
    %947 = vmatprep.subr.mxu0 0.0
    %948 = vmatpush1.msra.mxu0 %v245
    %949 = vmatprep.subr.mxu0 0.0
    %950 = vmatpush1.msra.mxu0 %v246
    %951 = vmatprep.subr.mxu0 0.0
    %952 = vmatpush1.msra.mxu0 0.0
    %953 = vmatprep.subr.mxu0 0.0
    %954 = vmatpush1.msra.mxu0 0.0
    %955 = vmatprep.subr.mxu0 0.0
    %956 = vmatpush1.msra.mxu0 0.0
    %957 = vmatprep.subr.mxu0 0.0
    %958 = vmatpush1.msra.mxu0 0.0
    %959 = vmatprep.subr.mxu0 0.0
    %960 = vmatpush1.msra.mxu0 0.0
    %961 = vmatprep.subr.mxu0 0.0
    %962 = vmatpush1.msra.mxu0 0.0
    %963 = vmatprep.subr.mxu0 0.0
    %964 = vmatpush1.msra.mxu0 0.0
    %965 = vmatprep.subr.mxu0 0.0
    %966 = vmatpush1.msra.mxu0 0.0
    %967 = vmatprep.subr.mxu0 0.0
    %968 = vmatpush1.msra.mxu0 0.0
    %969 = vmatprep.subr.mxu0 0.0
    %970 = vmatpush1.msra.mxu0 0.0
    %971 = vmatprep.subr.mxu0 0.0
    %972 = vmatpush1.msra.mxu0 0.0
    %973 = vmatprep.subr.mxu0 0.0
    %974 = vmatpush1.msra.mxu0 0.0
    %975 = vmatprep.subr.mxu0 0.0
    %976 = vmatpush1.msra.mxu0 0.0
    %977 = vmatprep.subr.mxu0 0.0
    %978 = vmatpush1.msra.mxu0 0.0
    %979 = vmatprep.subr.mxu0 0.0
    %980 = vmatpush1.msra.mxu0 0.0
    %981 = vmatprep.subr.mxu0 0.0
    %982 = vmatpush1.msra.mxu0 0.0
    %983 = vmatprep.subr.mxu0 0.0
    %984 = vmatpush1.msra.mxu0 0.0
    %985 = vmatprep.subr.mxu0 0.0
    %986 = vmatpush1.msra.mxu0 0.0
    %987 = vmatprep.subr.mxu0 0.0
    %988 = vmatpush1.msra.mxu0 0.0
    %989 = vmatprep.subr.mxu0 0.0
    %990 = vmatpush1.msra.mxu0 0.0
    %991 = vmatprep.subr.mxu0 0.0
    %992 = vmatpush1.msra.mxu0 0.0
    %993 = vmatprep.subr.mxu0 0.0
    %994 = vmatpush1.msra.mxu0 0.0
    %995 = vmatprep.subr.mxu0 0.0
    %996 = vmatpush1.msra.mxu0 0.0
    %997 = vmatprep.subr.mxu0 0.0
    %998 = vmatpush1.msra.mxu0 0.0
    %999 = vmatprep.subr.mxu0 0.0
    %1000 = vmatpush1.msra.mxu0 0.0
    %1001 = vmatprep.subr.mxu0 0.0
    %1002 = vmatpush1.msra.mxu0 0.0
    %1003 = vmatprep.subr.mxu0 0.0
    %1004 = vmatpush1.msra.mxu0 0.0
    %1005 = vmatprep.subr.mxu0 0.0
    %1006 = vmatpush1.msra.mxu0 0.0
    %1007 = vmatprep.mubr.f32.mxu0 0.0
    %1008 = vmatmul.mubr.f32.gmra.mrb[0].mxu0 %v941
    %v1009 = vpop.f32.mrb[0].mxu0
    %v1010 = vadd.f32 %v234, %v1009
    %v1011 = vpop.f32.mrb[0].mxu0
    %1012 = vdwg.mxu0
    %v1013 = vxor.u32 %v1010, 2147483648
    %v1014 = vmul.f32 %v1013, 1.442695
    %v1015 = vpow.pop %v1014
    %v1016 = vadd.f32 %v1015, 1.0
    %v1017 = vrcp.pop %v1016
    %v1018 = vmul.f32 1.0, %v1017
    %v1019 = vtanh.pop %v1010
    %v1020 = vmul.f32 %v1018, %v931
    %1022 = vrot.lane.b32.xlu0 %v1019, 64
    %v1023 = vpop.permute.xlu0 %1022
    %v1025 = vmul.f32 %v1018, %v1023
    %1027 = vrot.lane.b32.xlu0 %v1025, 32
    %v1028 = vpop.permute.xlu0 %1027
    %v1030 = vadd.f32 %v1020, %v1028
    %v1031 = vtanh.pop %v1030
    %1033 = vrot.lane.b32.xlu0 %v1031, 64
    %v1034 = vpop.permute.xlu0 %1033
    %v1036 = vmul.f32 %v1018, %v1034
    %v1038 = vunpack.c.l.s4 1966171168
    %v1039 = vunpack.c.0.s8 %v1038
    %v1040 = vlaneseq
    %v1041 = vshrl.u32 %v1040, 7
    %v1042 = vsub.s32 %v1039, %v1041
    %v1043 = vrot.slane %v343, %v1042
    %v1044 = vcombine.high %v1043, %v1043
    %v1046 = vunpack.c.l.s4 1966171168
    %v1047 = vunpack.c.0.s8 %v1046
    %v1048 = vlaneseq
    %v1049 = vshrl.u32 %v1048, 7
    %v1050 = vsub.s32 %v1047, %v1049
    %v1051 = vrot.slane %v1043, %v1050
    %v1053 = vunpack.c.l.s4 1966171168
    %v1054 = vunpack.c.0.s8 %v1053
    %v1055 = vlaneseq
    %v1056 = vshrl.u32 %v1055, 7
    %v1057 = vsub.s32 %v1054, %v1056
    %v1058 = vrot.slane %v1044, %v1057
    %v1062 = vunpack.c.l.s4 1966171168
    %v1063 = vunpack.c.0.s8 %v1062
    %v1064 = vlaneseq
    %v1065 = vshrl.u32 %v1064, 7
    %v1066 = vsub.s32 %v1063, %v1065
    %v1067 = vrot.slane %v442, %v1066
    %v1068 = vcombine.high %v1067, %v1067
    %v1070 = vunpack.c.l.s4 1966171168
    %v1071 = vunpack.c.0.s8 %v1070
    %v1072 = vlaneseq
    %v1073 = vshrl.u32 %v1072, 7
    %v1074 = vsub.s32 %v1071, %v1073
    %v1075 = vrot.slane %v1067, %v1074
    %v1077 = vunpack.c.l.s4 1966171168
    %v1078 = vunpack.c.0.s8 %v1077
    %v1079 = vlaneseq
    %v1080 = vshrl.u32 %v1079, 7
    %v1081 = vsub.s32 %v1078, %v1080
    %v1082 = vrot.slane %v1068, %v1081
    %v1084 = vunpack.c.l.s4 1966171168
    %v1085 = vunpack.c.0.s8 %v1084
    %v1086 = vlaneseq
    %v1087 = vshrl.u32 %v1086, 7
    %v1088 = vsub.s32 %v1085, %v1087
    %v1089 = vrot.slane %v541, %v1088
    %v1090 = vcombine.high %v1089, %v1089
    %v1092 = vunpack.c.l.s4 1966171168
    %v1093 = vunpack.c.0.s8 %v1092
    %v1094 = vlaneseq
    %v1095 = vshrl.u32 %v1094, 7
    %v1096 = vsub.s32 %v1093, %v1095
    %v1097 = vrot.slane %v1089, %v1096
    %v1099 = vunpack.c.l.s4 1966171168
    %v1100 = vunpack.c.0.s8 %v1099
    %v1101 = vlaneseq
    %v1102 = vshrl.u32 %v1101, 7
    %v1103 = vsub.s32 %v1100, %v1102
    %v1104 = vrot.slane %v1090, %v1103
    %v1106 = vunpack.c.l.s4 1966171168
    %v1107 = vunpack.c.0.s8 %v1106
    %v1108 = vlaneseq
    %v1109 = vshrl.u32 %v1108, 7
    %v1110 = vsub.s32 %v1107, %v1109
    %v1111 = vrot.slane %v640, %v1110
    %v1112 = vcombine.high %v1111, %v1111
    %v1114 = vunpack.c.l.s4 1966171168
    %v1115 = vunpack.c.0.s8 %v1114
    %v1116 = vlaneseq
    %v1117 = vshrl.u32 %v1116, 7
    %v1118 = vsub.s32 %v1115, %v1117
    %v1119 = vrot.slane %v1111, %v1118
    %v1121 = vunpack.c.l.s4 1966171168
    %v1122 = vunpack.c.0.s8 %v1121
    %v1123 = vlaneseq
    %v1124 = vshrl.u32 %v1123, 7
    %v1125 = vsub.s32 %v1122, %v1124
    %v1126 = vrot.slane %v1112, %v1125
    %v1128 = vunpack.c.l.s4 1966171168
    %v1129 = vunpack.c.0.s8 %v1128
    %v1130 = vlaneseq
    %v1131 = vshrl.u32 %v1130, 7
    %v1132 = vsub.s32 %v1129, %v1131
    %v1133 = vrot.slane %v739, %v1132
    %v1134 = vcombine.high %v1133, %v1133
    %v1136 = vunpack.c.l.s4 1966171168
    %v1137 = vunpack.c.0.s8 %v1136
    %v1138 = vlaneseq
    %v1139 = vshrl.u32 %v1138, 7
    %v1140 = vsub.s32 %v1137, %v1139
    %v1141 = vrot.slane %v1133, %v1140
    %v1143 = vunpack.c.l.s4 1966171168
    %v1144 = vunpack.c.0.s8 %v1143
    %v1145 = vlaneseq
    %v1146 = vshrl.u32 %v1145, 7
    %v1147 = vsub.s32 %v1144, %v1146
    %v1148 = vrot.slane %v1134, %v1147
    %v1150 = vunpack.c.l.s4 1966171168
    %v1151 = vunpack.c.0.s8 %v1150
    %v1152 = vlaneseq
    %v1153 = vshrl.u32 %v1152, 7
    %v1154 = vsub.s32 %v1151, %v1153
    %v1155 = vrot.slane %v838, %v1154
    %v1156 = vcombine.high %v1155, %v1155
    %v1158 = vunpack.c.l.s4 1966171168
    %v1159 = vunpack.c.0.s8 %v1158
    %v1160 = vlaneseq
    %v1161 = vshrl.u32 %v1160, 7
    %v1162 = vsub.s32 %v1159, %v1161
    %v1163 = vrot.slane %v1155, %v1162
    %v1165 = vunpack.c.l.s4 1966171168
    %v1166 = vunpack.c.0.s8 %v1165
    %v1167 = vlaneseq
    %v1168 = vshrl.u32 %v1167, 7
    %v1169 = vsub.s32 %v1166, %v1168
    %v1170 = vrot.slane %v1156, %v1169
    %v1172 = vunpack.c.l.s4 1966171168
    %v1173 = vunpack.c.0.s8 %v1172
    %v1174 = vlaneseq
    %v1175 = vshrl.u32 %v1174, 7
    %v1176 = vsub.s32 %v1173, %v1175
    %v1177 = vrot.slane %v937, %v1176
    %v1178 = vcombine.high %v1177, %v1177
    %v1180 = vunpack.c.l.s4 1966171168
    %v1181 = vunpack.c.0.s8 %v1180
    %v1182 = vlaneseq
    %v1183 = vshrl.u32 %v1182, 7
    %v1184 = vsub.s32 %v1181, %v1183
    %v1185 = vrot.slane %v1177, %v1184
    %v1187 = vunpack.c.l.s4 1966171168
    %v1188 = vunpack.c.0.s8 %v1187
    %v1189 = vlaneseq
    %v1190 = vshrl.u32 %v1189, 7
    %v1191 = vsub.s32 %v1188, %v1190
    %v1192 = vrot.slane %v1178, %v1191
    %v1195 = vunpack.c.l.s4 1966171168
    %v1196 = vunpack.c.0.s8 %v1195
    %v1197 = vlaneseq
    %v1198 = vshrl.u32 %v1197, 7
    %v1199 = vsub.s32 %v1196, %v1198
    %v1200 = vrot.slane %v1036, %v1199
    %v1201 = vcombine.high %v1200, %v1200
    %v1203 = vunpack.c.l.s4 1966171168
    %v1204 = vunpack.c.0.s8 %v1203
    %v1205 = vlaneseq
    %v1206 = vshrl.u32 %v1205, 7
    %v1207 = vsub.s32 %v1204, %v1206
    %v1208 = vrot.slane %v1200, %v1207
    %v1210 = vunpack.c.l.s4 1966171168
    %v1211 = vunpack.c.0.s8 %v1210
    %v1212 = vlaneseq
    %v1213 = vshrl.u32 %v1212, 7
    %v1214 = vsub.s32 %v1211, %v1213
    %v1215 = vrot.slane %v1201, %v1214
    %v1216 = vlaneseq
    %v1217 = vshrl.u32 %v1216, 7
    %v1218 = vsub.s32 0, %v1217
    %v1219 = vrot.slane %v1075, %v1218
    %v1220 = vlaneseq
    %v1221 = vshrl.u32 %v1220, 7
    %v1222 = vsub.s32 0, %v1221
    %v1223 = vrot.slane %v1082, %v1222
    %v1226 = vlaneseq
    %v1227 = vshrl.u32 %v1226, 7
    %v1228 = vsub.s32 0, %v1227
    %v1229 = vrot.slane %v1097, %v1228
    %v1230 = vlaneseq
    %v1231 = vshrl.u32 %v1230, 7
    %v1232 = vsub.s32 0, %v1231
    %v1233 = vrot.slane %v1104, %v1232
    %v1236 = vlaneseq
    %v1237 = vshrl.u32 %v1236, 7
    %v1238 = vsub.s32 0, %v1237
    %v1239 = vrot.slane %v1119, %v1238
    %v1240 = vlaneseq
    %v1241 = vshrl.u32 %v1240, 7
    %v1242 = vsub.s32 0, %v1241
    %v1243 = vrot.slane %v1126, %v1242
    %v1246 = vlaneseq
    %v1247 = vshrl.u32 %v1246, 7
    %v1248 = vsub.s32 0, %v1247
    %v1249 = vrot.slane %v1141, %v1248
    %v1250 = vlaneseq
    %v1251 = vshrl.u32 %v1250, 7
    %v1252 = vsub.s32 0, %v1251
    %v1253 = vrot.slane %v1148, %v1252
    %v1256 = vlaneseq
    %v1257 = vshrl.u32 %v1256, 7
    %v1258 = vsub.s32 0, %v1257
    %v1259 = vrot.slane %v1163, %v1258
    %v1260 = vlaneseq
    %v1261 = vshrl.u32 %v1260, 7
    %v1262 = vsub.s32 0, %v1261
    %v1263 = vrot.slane %v1170, %v1262
    %v1266 = vlaneseq
    %v1267 = vshrl.u32 %v1266, 7
    %v1268 = vsub.s32 0, %v1267
    %v1269 = vrot.slane %v1185, %v1268
    %v1270 = vlaneseq
    %v1271 = vshrl.u32 %v1270, 7
    %v1272 = vsub.s32 0, %v1271
    %v1273 = vrot.slane %v1192, %v1272
    %v1276 = vlaneseq
    %v1277 = vshrl.u32 %v1276, 7
    %v1278 = vsub.s32 0, %v1277
    %v1279 = vrot.slane %v1208, %v1278
    %v1280 = vlaneseq
    %v1281 = vshrl.u32 %v1280, 7
    %v1282 = vsub.s32 0, %v1281
    %v1283 = vrot.slane %v1215, %v1282
    %vm1286 = vcmask 1040384
    %v1287 = vsel %vm1286, %v1051, %v1219
    %v1288 = vsel %vm1286, %v1058, %v1223
    %vm1289 = vcmask 1041408
    %v1290 = vsel %vm1289, %v1287, %v1229
    %v1291 = vsel %vm1289, %v1288, %v1233
    %vm1292 = vcmask 1042432
    %v1293 = vsel %vm1292, %v1290, %v1239
    %v1294 = vsel %vm1292, %v1291, %v1243
    %vm1295 = vcmask 1043456
    %v1296 = vsel %vm1295, %v1293, %v1249
    %v1297 = vsel %vm1295, %v1294, %v1253
    %vm1298 = vcmask 1044480
    %v1299 = vsel %vm1298, %v1296, %v1259
    %v1300 = vsel %vm1298, %v1297, %v1263
    %vm1301 = vcmask 1045504
    %v1302 = vsel %vm1301, %v1299, %v1269
    %v1303 = vsel %vm1301, %v1300, %v1273
    %vm1304 = vcmask 1046528
    %v1305 = vsel %vm1304, %v1302, %v1279
    %v1306 = vsel %vm1304, %v1303, %v1283
    %v1307 = vld [vmem:[#allocation5] sm:$0xff]
    %v1308 = vld [vmem:[#allocation5 + $0x8] sm:$0xff]
    %v1309 = vld [vmem:[#allocation5 + $0x10] sm:$0xff]
    %v1310 = vld [vmem:[#allocation5 + $0x18] sm:$0xff]
    %v1311 = vld [vmem:[%s5] sm:$0x1]
    %v1313 = vlaneseq
    %v1314 = vshrl.u32 %v1313, 7
    %v1315 = vsub.s32 0, %v1314
    %v1316 = vrot.slane %v1311, %v1315
    %1320 = vrot.lane.b32.xlu0 %v1305, 32
    %v1321 = vpop.permute.xlu0 %1320
    %1322 = vrot.lane.b32.xlu0 %v1306, 32
    %v1323 = vpop.permute.xlu0 %1322
    %v1324 = vsel %vm119, %v1321, 0
    %v1326 = vsel %vm119, %v1323, 0
    %1328 = vmatprep.subr.mxu0 0.0
    %1329 = vmatpush1.msra.mxu0 %v1307
    %1330 = vmatprep.subr.mxu0 0.0
    %1331 = vmatpush1.msra.mxu0 %v1308
    %1332 = vmatprep.subr.mxu0 0.0
    %1333 = vmatpush1.msra.mxu0 %v1309
    %1334 = vmatprep.subr.mxu0 0.0
    %1335 = vmatpush1.msra.mxu0 %v1310
    %1336 = vmatprep.subr.mxu0 0.0
    %1337 = vmatpush1.msra.mxu0 0.0
    %1338 = vmatprep.subr.mxu0 0.0
    %1339 = vmatpush1.msra.mxu0 0.0
    %1340 = vmatprep.subr.mxu0 0.0
    %1341 = vmatpush1.msra.mxu0 0.0
    %1342 = vmatprep.subr.mxu0 0.0
    %1343 = vmatpush1.msra.mxu0 0.0
    %1344 = vmatprep.subr.mxu0 0.0
    %1345 = vmatpush1.msra.mxu0 0.0
    %1346 = vmatprep.subr.mxu0 0.0
    %1347 = vmatpush1.msra.mxu0 0.0
    %1348 = vmatprep.subr.mxu0 0.0
    %1349 = vmatpush1.msra.mxu0 0.0
    %1350 = vmatprep.subr.mxu0 0.0
    %1351 = vmatpush1.msra.mxu0 0.0
    %1352 = vmatprep.subr.mxu0 0.0
    %1353 = vmatpush1.msra.mxu0 0.0
    %1354 = vmatprep.subr.mxu0 0.0
    %1355 = vmatpush1.msra.mxu0 0.0
    %1356 = vmatprep.subr.mxu0 0.0
    %1357 = vmatpush1.msra.mxu0 0.0
    %1358 = vmatprep.subr.mxu0 0.0
    %1359 = vmatpush1.msra.mxu0 0.0
    %1360 = vmatprep.subr.mxu0 0.0
    %1361 = vmatpush1.msra.mxu0 0.0
    %1362 = vmatprep.subr.mxu0 0.0
    %1363 = vmatpush1.msra.mxu0 0.0
    %1364 = vmatprep.subr.mxu0 0.0
    %1365 = vmatpush1.msra.mxu0 0.0
    %1366 = vmatprep.subr.mxu0 0.0
    %1367 = vmatpush1.msra.mxu0 0.0
    %1368 = vmatprep.subr.mxu0 0.0
    %1369 = vmatpush1.msra.mxu0 0.0
    %1370 = vmatprep.subr.mxu0 0.0
    %1371 = vmatpush1.msra.mxu0 0.0
    %1372 = vmatprep.subr.mxu0 0.0
    %1373 = vmatpush1.msra.mxu0 0.0
    %1374 = vmatprep.subr.mxu0 0.0
    %1375 = vmatpush1.msra.mxu0 0.0
    %1376 = vmatprep.subr.mxu0 0.0
    %1377 = vmatpush1.msra.mxu0 0.0
    %1378 = vmatprep.subr.mxu0 0.0
    %1379 = vmatpush1.msra.mxu0 0.0
    %1380 = vmatprep.subr.mxu0 0.0
    %1381 = vmatpush1.msra.mxu0 0.0
    %1382 = vmatprep.subr.mxu0 0.0
    %1383 = vmatpush1.msra.mxu0 0.0
    %1384 = vmatprep.subr.mxu0 0.0
    %1385 = vmatpush1.msra.mxu0 0.0
    %1386 = vmatprep.subr.mxu0 0.0
    %1387 = vmatpush1.msra.mxu0 0.0
    %1388 = vmatprep.subr.mxu0 0.0
    %1389 = vmatpush1.msra.mxu0 0.0
    %1390 = vmatprep.subr.mxu0 0.0
    %1391 = vmatpush1.msra.mxu0 0.0
    %1392 = vmatprep.mubr.f32.mxu0 0.0
    %1393 = vmatmul.mubr.f32.gmra.mrb[0].mxu0 %v1324
    %v1394 = vpop.f32.mrb[0].mxu0
    %v1395 = vadd.f32 %v1316, %v1394
    %v1396 = vpop.f32.mrb[0].mxu0
    %1397 = vmatprep.mubr.f32.mxu0 0.0
    %1398 = vmatmul.mubr.f32.gmra.mrb[0].mxu0 %v1326
    %v1399 = vpop.f32.mrb[0].mxu0
    %v1400 = vadd.f32 %v1316, %v1399
    %v1401 = vpop.f32.mrb[0].mxu0
    %1402 = vdwg.mxu0
    %v1403 = vmax.f32 %v1395, 0.0
    %v1404 = vmax.f32 %v1400, 0.0
    %v1405 = vld [vmem:[%s6] sm:$0xff]
    %v1406 = vld [vmem:[%s6 + $0x8] sm:$0xff]
    %v1407 = vld [vmem:[%s6 + $0x10] sm:$0xff]
    %v1408 = vld [vmem:[%s6 + $0x18] sm:$0xff]
    %v1409 = vld [vmem:[%s7] sm:$0x1]
    %v1411 = vlaneseq
    %v1412 = vshrl.u32 %v1411, 7
    %v1413 = vsub.s32 0, %v1412
    %v1414 = vrot.slane %v1409, %v1413
    %v1417 = vsel %vm119, %v1403, 0
    %v1420 = vsel %vm119, %v1404, 0
    %1422 = vmatprep.subr.mxu0 0.0
    %1423 = vmatpush1.msra.mxu0 %v1405
    %1424 = vmatprep.subr.mxu0 0.0
    %1425 = vmatpush1.msra.mxu0 %v1406
    %1426 = vmatprep.subr.mxu0 0.0
    %1427 = vmatpush1.msra.mxu0 %v1407
    %1428 = vmatprep.subr.mxu0 0.0
    %1429 = vmatpush1.msra.mxu0 %v1408
    %1430 = vmatprep.subr.mxu0 0.0
    %1431 = vmatpush1.msra.mxu0 0.0
    %1432 = vmatprep.subr.mxu0 0.0
    %1433 = vmatpush1.msra.mxu0 0.0
    %1434 = vmatprep.subr.mxu0 0.0
    %1435 = vmatpush1.msra.mxu0 0.0
    %1436 = vmatprep.subr.mxu0 0.0
    %1437 = vmatpush1.msra.mxu0 0.0
    %1438 = vmatprep.subr.mxu0 0.0
    %1439 = vmatpush1.msra.mxu0 0.0
    %1440 = vmatprep.subr.mxu0 0.0
    %1441 = vmatpush1.msra.mxu0 0.0
    %1442 = vmatprep.subr.mxu0 0.0
    %1443 = vmatpush1.msra.mxu0 0.0
    %1444 = vmatprep.subr.mxu0 0.0
    %1445 = vmatpush1.msra.mxu0 0.0
    %1446 = vmatprep.subr.mxu0 0.0
    %1447 = vmatpush1.msra.mxu0 0.0
    %1448 = vmatprep.subr.mxu0 0.0
    %1449 = vmatpush1.msra.mxu0 0.0
    %1450 = vmatprep.subr.mxu0 0.0
    %1451 = vmatpush1.msra.mxu0 0.0
    %1452 = vmatprep.subr.mxu0 0.0
    %1453 = vmatpush1.msra.mxu0 0.0
    %1454 = vmatprep.subr.mxu0 0.0
    %1455 = vmatpush1.msra.mxu0 0.0
    %1456 = vmatprep.subr.mxu0 0.0
    %1457 = vmatpush1.msra.mxu0 0.0
    %1458 = vmatprep.subr.mxu0 0.0
    %1459 = vmatpush1.msra.mxu0 0.0
    %1460 = vmatprep.subr.mxu0 0.0
    %1461 = vmatpush1.msra.mxu0 0.0
    %1462 = vmatprep.subr.mxu0 0.0
    %1463 = vmatpush1.msra.mxu0 0.0
    %1464 = vmatprep.subr.mxu0 0.0
    %1465 = vmatpush1.msra.mxu0 0.0
    %1466 = vmatprep.subr.mxu0 0.0
    %1467 = vmatpush1.msra.mxu0 0.0
    %1468 = vmatprep.subr.mxu0 0.0
    %1469 = vmatpush1.msra.mxu0 0.0
    %1470 = vmatprep.subr.mxu0 0.0
    %1471 = vmatpush1.msra.mxu0 0.0
    %1472 = vmatprep.subr.mxu0 0.0
    %1473 = vmatpush1.msra.mxu0 0.0
    %1474 = vmatprep.subr.mxu0 0.0
    %1475 = vmatpush1.msra.mxu0 0.0
    %1476 = vmatprep.subr.mxu0 0.0
    %1477 = vmatpush1.msra.mxu0 0.0
    %1478 = vmatprep.subr.mxu0 0.0
    %1479 = vmatpush1.msra.mxu0 0.0
    %1480 = vmatprep.subr.mxu0 0.0
    %1481 = vmatpush1.msra.mxu0 0.0
    %1482 = vmatprep.subr.mxu0 0.0
    %1483 = vmatpush1.msra.mxu0 0.0
    %1484 = vmatprep.subr.mxu0 0.0
    %1485 = vmatpush1.msra.mxu0 0.0
    %1486 = vmatprep.mubr.f32.mxu0 0.0
    %1487 = vmatmul.mubr.f32.gmra.mrb[0].mxu0 %v1417
    %v1488 = vpop.f32.mrb[0].mxu0
    %v1489 = vadd.f32 %v1414, %v1488
    %v1490 = vpop.f32.mrb[0].mxu0
    %1491 = vmatprep.mubr.f32.mxu0 0.0
    %1492 = vmatmul.mubr.f32.gmra.mrb[0].mxu0 %v1420
    %v1493 = vpop.f32.mrb[0].mxu0
    %v1494 = vadd.f32 %v1414, %v1493
    %v1495 = vpop.f32.mrb[0].mxu0
    %1496 = vdwg.mxu0
    %vm1497 = vcmask 80896
    %v1498 = vsel %vm1497, %v1489, -inf
    %v1499 = vrot.slane %v1498, 4
    %v1500 = vmax.f32 %v1498, %v1499
    %v1501 = vrot.slane %v1500, 2
    %v1502 = vmax.f32 %v1500, %v1501
    %v1503 = vrot.slane %v1502, 1
    %v1504 = vmax.f32 %v1502, %v1503
    %v1505 = vsel %vm1497, %v1494, -inf
    %v1506 = vrot.slane %v1505, 4
    %v1507 = vmax.f32 %v1505, %v1506
    %v1508 = vrot.slane %v1507, 2
    %v1509 = vmax.f32 %v1507, %v1508
    %v1510 = vrot.slane %v1509, 1
    %v1511 = vmax.f32 %v1509, %v1510
    %v1512 = vsub.f32 %v1489, %v1504
    %v1513 = vsub.f32 %v1494, %v1511
    %v1514 = vmul.f32 %v1512, 1.442695
    %v1515 = vpow.pop %v1514
    %v1516 = vmul.f32 %v1513, 1.442695
    %v1517 = vpow.pop %v1516
    %v1518 = vsel %vm1497, %v1515, 0.0
    %v1519 = vrot.slane %v1518, 4
    %v1520 = vadd.f32 %v1518, %v1519
    %v1521 = vrot.slane %v1520, 2
    %v1522 = vadd.f32 %v1520, %v1521
    %v1523 = vrot.slane %v1522, 1
    %v1524 = vadd.f32 %v1522, %v1523
    %v1525 = vsel %vm1497, %v1517, 0.0
    %v1526 = vrot.slane %v1525, 4
    %v1527 = vadd.f32 %v1525, %v1526
    %v1528 = vrot.slane %v1527, 2
    %v1529 = vadd.f32 %v1527, %v1528
    %v1530 = vrot.slane %v1529, 1
    %v1531 = vadd.f32 %v1529, %v1530
    %v1532 = vlog2.pop %v1524
    %v1533 = vmul.f32 %v1532, 0.6931472
    %v1534 = vlog2.pop %v1531
    %v1535 = vmul.f32 %v1534, 0.6931472
    %v1536 = vsub.f32 %v1512, %v1533
    %v1537 = vsub.f32 %v1513, %v1535
    %1538 = vst.msk [vmem:[#allocation7] sm:$0xff] %vm1497, %v1536
    %1539 = vst.msk [vmem:[#allocation7 + $0x8] sm:$0xff] %vm1497, %v1537
    // Predicated region
    $region42: #{rnn_model_forward.1} parent=1 // pred_check
      _
    $region43: #{rnn_model_forward.1} parent=1 // pred_check_branch
      %1541 = sbr.rel (0) target = $region45
    $region44: #{rnn_model_forward.1} parent=1 // pred_region
      %s1543 = ssub.s32 256, 256
      %1544 = vsyncadd [#allocation4], %s1543
      %s1545 = sshll.u32 [#allocation7], 4
      %s1546 = int_to_ptr.vmem [resolvable:$true] %s1545
      %1551 = dma.vmem_to_hbm [thread:$0]  %s1546, 256, %s8, [#allocation4], 128, 128, 8
    $region45: #{rnn_model_forward.1} parent=1 // pred_fallthru
      _
    // Predicated region
    $region46: #{rnn_model_forward.1} parent=1 // pred_check
      _
    $region47: #{rnn_model_forward.1} parent=1 // pred_check_branch
      %1553 = sbr.rel (0) target = $region49
    $region48: #{rnn_model_forward.1} parent=1 // pred_region
      %1554 = dma.done [#allocation4], 256
    $region49: #{rnn_model_forward.1} parent=1 // pred_fallthru
      _
    %1555 = vsyncpa [#allocation3], 1
    %1556 = vsyncpa [#allocation6], 1
    %1557 = vsyncpa [#allocation4], 1

</llo_original>
